<compile_context>
chip_gen: v5e
topology: v5e:2x2
jax: 0.10.0
libtpu: 0.0.40
codegen_flags: <defaults>
</compile_context>

<pallas_src>
import functools

import jax
import jax.numpy as jnp
import numpy as np
from jax.experimental import pallas as pl
from jax.experimental.pallas import tpu as pltpu

LANES = 128


def _nms_coords_kernel(c_ref, p_ref, o_ref, *, topk, max_disp, num_cands):
    # c_ref: (1, M, 3, Ts, 128) f32 VMEM   p_ref: (N, 12) f32 SMEM
    # o_ref: (1, topk, Ts, 128) i32 VMEM
    n = pl.program_id(0)
    # 12 pinhole-projection coefficients as scalars from SMEM.
    p = [[p_ref[n, 4 * r + c] for c in range(4)] for r in range(3)]

    # projection(coords, P): rows of P @ [x; y; z; 1], then perspective divide.
    us, vs = [], []
    for m in range(num_cands):
        x = c_ref[0, m, 0]          # (Ts, 128) dense pixel tile
        y = c_ref[0, m, 1]
        z = c_ref[0, m, 2]
        pr0 = p[0][0] * x + p[0][1] * y + p[0][2] * z + p[0][3]
        pr1 = p[1][0] * x + p[1][1] * y + p[1][2] * z + p[1][3]
        pr2 = p[2][0] * x + p[2][1] * y + p[2][2] * z + p[2][3]
        inv = 1.0 / pr2             # exact divide: stay bit-identical with reference
        us.append(pr0 * inv)        # projected x
        vs.append(pr1 * inv)        # projected y

    alive = [jnp.ones_like(us[0], dtype=jnp.bool_) for _ in range(num_cands)]
    prev = jnp.zeros(us[0].shape, dtype=jnp.int32)
    thr = jnp.float32(max_disp * max_disp)

    for j in range(topk):
        # lowest-index surviving candidate per pixel (== M if none survive)
        sel = jnp.full(prev.shape, num_cands, dtype=jnp.int32)
        for m in range(num_cands - 1, -1, -1):
            sel = jnp.where(alive[m], jnp.int32(m), sel)
        # TODO(synk): exact padding behaviour of the original CUDA nms_op when fewer
        # than topk candidates survive is unknown; we repeat the last selected index.
        sel = jnp.where(sel < num_cands, sel, prev)

        # (u, v) of the selected candidate per pixel (pure VPU selects, no XLU work).
        u_s = jnp.zeros_like(us[0])
        v_s = jnp.zeros_like(vs[0])
        for m in range(num_cands):
            hit = sel == m
            u_s = jnp.where(hit, us[m], u_s)
            v_s = jnp.where(hit, vs[m], v_s)

        # suppress every candidate within max_displacement of the selection
        for m in range(num_cands):
            d2 = (us[m] - u_s) ** 2 + (vs[m] - v_s) ** 2
            alive[m] = jnp.logical_and(alive[m], d2 > thr)

        o_ref[0, j] = sel           # lane-dense (Ts, 128) store per topk slot
        prev = sel


def _pick_row_tile(num_rows, batch, num_cands):
    """Largest legal sublane tile (multiple of 8 or full extent) dividing num_rows."""
    # target <= ~2 MB per input block so double-buffering fits v7x's smaller VMEM
    bytes_per_row = num_cands * 3 * LANES * 4
    cap = max(8, min(128, (2 * 1024 * 1024) // bytes_per_row))
    # keep >= 2 grid steps on the row axis when batch == 1 so both v7x TCs get work
    cap = min(cap, num_rows if batch > 1 else max(num_rows // 2, 1))
    for ts in range(cap, 0, -1):
        if num_rows % ts == 0 and (ts % 8 == 0 or ts == num_rows):
            return ts
    return num_rows


def nms_coords(coords_grid, anchor_P, topk, max_displacement):
    """coords_grid: (N, M, 3, H, W) f32, anchor_P: (N, 3, 4) f32 -> (N, H, W, topk) i32."""
    N, M, C, H, W = coords_grid.shape
    assert C == 3
    P = H * W

    c = jnp.asarray(coords_grid, jnp.float32).reshape(N, M, 3, P)   # free reshape
    P_pad = ((P + LANES - 1) // LANES) * LANES
    if P_pad != P:
        # TODO(synk): only hit when H*W is not a multiple of 128 (costs one pad copy).
        c = jnp.pad(c, ((0, 0), (0, 0), (0, 0), (0, P_pad - P)))
    R = P_pad // LANES
    c = c.reshape(N, M, 3, R, LANES)                                # free reshape

    Ts = _pick_row_tile(R, N, M)
    p_flat = jnp.asarray(anchor_P, jnp.float32).reshape(N, 12)

    kernel = functools.partial(
        _nms_coords_kernel, topk=topk, max_disp=float(max_displacement), num_cands=M)

    idxs = pl.pallas_call(
        kernel,
        out_shape=jax.ShapeDtypeStruct((N, topk, R, LANES), jnp.int32),
        grid=(N, R // Ts),
        in_specs=[
            pl.BlockSpec((1, M, 3, Ts, LANES), lambda n, t: (n, 0, 0, t, 0)),
            pl.BlockSpec(memory_space=pltpu.MemorySpace.SMEM),       # 12 scalars / image
        ],
        out_specs=pl.BlockSpec((1, topk, Ts, LANES), lambda n, t: (n, 0, t, 0)),
        compiler_params=pltpu.CompilerParams(
            dimension_semantics=("parallel", "parallel"),
            vmem_limit_bytes=32 * 1024 * 1024),
    )(c, p_flat)

    # lane-dense kernel output (N, topk, P) -> (N, H, W, topk); the transpose only
    # touches the small index tensor.  PyTorch returns .long(); we keep int32 (an
    # int64 writeback would just double HBM traffic of a memory-bound op).
    idxs = idxs.reshape(N, topk, P_pad)[:, :, :P]
    return jnp.transpose(idxs, (0, 2, 1)).reshape(N, H, W, topk)


def nms_coords_ref(coords_grid, anchor_P, topk, max_displacement):
    """Pure-JAX reference with op-for-op identical arithmetic."""
    N, M, _, H, W = coords_grid.shape
    P = H * W
    c = jnp.transpose(coords_grid, (0, 2, 3, 4, 1)).reshape(N, 3, P, M)
    x, y, z = c[:, 0], c[:, 1], c[:, 2]
    Pm = anchor_P

    def prow(i):
        return (Pm[:, i, 0][:, None, None] * x + Pm[:, i, 1][:, None, None] * y
                + Pm[:, i, 2][:, None, None] * z + Pm[:, i, 3][:, None, None])

    pr0, pr1, pr2 = prow(0), prow(1), prow(2)
    inv = 1.0 / pr2
    u, v = pr0 * inv, pr1 * inv

    iota = jnp.arange(M, dtype=jnp.int32)
    alive = jnp.ones((N, P, M), dtype=bool)
    prev = jnp.zeros((N, P, 1), dtype=jnp.int32)
    thr = jnp.float32(max_displacement * max_displacement)
    outs = []
    for _ in range(topk):
        first_alive = jnp.min(jnp.where(alive, iota, M), axis=-1, keepdims=True)
        has_alive = first_alive < M
        sel = jnp.where(has_alive, first_alive, prev).astype(jnp.int32)
        outs.append(sel)
        one_hot = iota == sel
        u_s = jnp.sum(jnp.where(one_hot, u, 0.0), axis=-1, keepdims=True)
        v_s = jnp.sum(jnp.where(one_hot, v, 0.0), axis=-1, keepdims=True)
        d2 = (u - u_s) ** 2 + (v - v_s) ** 2
        alive = jnp.logical_and(alive, d2 > thr)
        prev = sel
    return jnp.concatenate(outs, axis=-1).reshape(N, H, W, topk)


if __name__ == "__main__":
    key = jax.random.PRNGKey(0)
    N, M, H, W = 2, 8, 16, 16
    topk, max_displacement = 3, 0.5

    k1, k2 = jax.random.split(key)
    coords_grid = jax.random.normal(k1, (N, M, 3, H, W), dtype=jnp.float32)
    # keep depth-like coordinate positive so the perspective divide is well-behaved
    coords_grid = coords_grid.at[:, :, 2].set(jnp.abs(coords_grid[:, :, 2]) + 1.0)

    anchor_P = jax.random.normal(k2, (N, 3, 4), dtype=jnp.float32)
    anchor_P = anchor_P.at[:, 2, :3].set(jnp.abs(anchor_P[:, 2, :3]) * 0.1)
    anchor_P = anchor_P.at[:, 2, 3].set(1.0)

    idxs = nms_coords(coords_grid, anchor_P, topk, max_displacement)
    idxs = jax.block_until_ready(idxs)

    ref = np.asarray(nms_coords_ref(coords_grid, anchor_P, topk, max_displacement))
    got = np.asarray(idxs)
    assert got.shape == (N, H, W, topk)
    assert np.array_equal(got.astype(np.int64), ref.astype(np.int64)), "mismatch vs reference"

    print("KERNEL_OK")
</pallas_src>

<mosaic_0001>
module attributes {stable_mosaic.version = 11 : i64} {
  func.func @_nms_coords_kernel(%arg0: i32, %arg1: i32, %arg2: memref<1x8x3x2x128xf32, #tpu.memory_space<vmem>>, %arg3: memref<2x12xf32, #tpu.memory_space<smem>>, %arg4: memref<1x3x2x128xi32, #tpu.memory_space<vmem>>) attributes {dimension_semantics = [#tpu.dimension_semantics<parallel>, #tpu.dimension_semantics<parallel>], iteration_bounds = array<i64: 2, 1>, scalar_prefetch = 0 : i64, scratch_operands = 0 : i64, tpu.core_type = #tpu.core_type<tc>, window_params = [{transform_indices = @transform_0, window_bounds = array<i64: 1, 8, 3, 2, 128>}, {transform_indices = @transform_1, window_bounds = array<i64: 2, 12>}, {transform_indices = @transform_2, window_bounds = array<i64: 1, 3, 2, 128>}]} {
    %0 = arith.index_cast %arg0 : i32 to index
    %c0 = arith.constant 0 : index
    %1 = memref.load %arg3[%0, %c0] : memref<2x12xf32, #tpu.memory_space<smem>>
    %2 = arith.index_cast %arg0 : i32 to index
    %c1 = arith.constant 1 : index
    %3 = memref.load %arg3[%2, %c1] : memref<2x12xf32, #tpu.memory_space<smem>>
    %4 = arith.index_cast %arg0 : i32 to index
    %c2 = arith.constant 2 : index
    %5 = memref.load %arg3[%4, %c2] : memref<2x12xf32, #tpu.memory_space<smem>>
    %6 = arith.index_cast %arg0 : i32 to index
    %c3 = arith.constant 3 : index
    %7 = memref.load %arg3[%6, %c3] : memref<2x12xf32, #tpu.memory_space<smem>>
    %8 = arith.index_cast %arg0 : i32 to index
    %c4 = arith.constant 4 : index
    %9 = memref.load %arg3[%8, %c4] : memref<2x12xf32, #tpu.memory_space<smem>>
    %10 = arith.index_cast %arg0 : i32 to index
    %c5 = arith.constant 5 : index
    %11 = memref.load %arg3[%10, %c5] : memref<2x12xf32, #tpu.memory_space<smem>>
    %12 = arith.index_cast %arg0 : i32 to index
    %c6 = arith.constant 6 : index
    %13 = memref.load %arg3[%12, %c6] : memref<2x12xf32, #tpu.memory_space<smem>>
    %14 = arith.index_cast %arg0 : i32 to index
    %c7 = arith.constant 7 : index
    %15 = memref.load %arg3[%14, %c7] : memref<2x12xf32, #tpu.memory_space<smem>>
    %16 = arith.index_cast %arg0 : i32 to index
    %c8 = arith.constant 8 : index
    %17 = memref.load %arg3[%16, %c8] : memref<2x12xf32, #tpu.memory_space<smem>>
    %18 = arith.index_cast %arg0 : i32 to index
    %c9 = arith.constant 9 : index
    %19 = memref.load %arg3[%18, %c9] : memref<2x12xf32, #tpu.memory_space<smem>>
    %20 = arith.index_cast %arg0 : i32 to index
    %c10 = arith.constant 10 : index
    %21 = memref.load %arg3[%20, %c10] : memref<2x12xf32, #tpu.memory_space<smem>>
    %22 = arith.index_cast %arg0 : i32 to index
    %c11 = arith.constant 11 : index
    %23 = memref.load %arg3[%22, %c11] : memref<2x12xf32, #tpu.memory_space<smem>>
    %c0_0 = arith.constant 0 : index
    %c0_1 = arith.constant 0 : index
    %c0_2 = arith.constant 0 : index
    %c0_3 = arith.constant 0 : index
    %c0_4 = arith.constant 0 : index
    %24 = vector.load %arg2[%c0_0, %c0_1, %c0_2, %c0_3, %c0_4] : memref<1x8x3x2x128xf32, #tpu.memory_space<vmem>>, vector<1x1x1x2x128xf32>
    %25 = vector.shape_cast %24 : vector<1x1x1x2x128xf32> to vector<2x128xf32>
    %c0_5 = arith.constant 0 : index
    %c0_6 = arith.constant 0 : index
    %c1_7 = arith.constant 1 : index
    %c0_8 = arith.constant 0 : index
    %c0_9 = arith.constant 0 : index
    %26 = vector.load %arg2[%c0_5, %c0_6, %c1_7, %c0_8, %c0_9] : memref<1x8x3x2x128xf32, #tpu.memory_space<vmem>>, vector<1x1x1x2x128xf32>
    %27 = vector.shape_cast %26 : vector<1x1x1x2x128xf32> to vector<2x128xf32>
    %c0_10 = arith.constant 0 : index
    %c0_11 = arith.constant 0 : index
    %c2_12 = arith.constant 2 : index
    %c0_13 = arith.constant 0 : index
    %c0_14 = arith.constant 0 : index
    %28 = vector.load %arg2[%c0_10, %c0_11, %c2_12, %c0_13, %c0_14] : memref<1x8x3x2x128xf32, #tpu.memory_space<vmem>>, vector<1x1x1x2x128xf32>
    %29 = vector.shape_cast %28 : vector<1x1x1x2x128xf32> to vector<2x128xf32>
    %30 = vector.broadcast %1 : f32 to vector<2x128xf32>
    %31 = arith.mulf %30, %25 : vector<2x128xf32>
    %32 = vector.broadcast %3 : f32 to vector<2x128xf32>
    %33 = arith.mulf %32, %27 : vector<2x128xf32>
    %34 = arith.addf %31, %33 : vector<2x128xf32>
    %35 = vector.broadcast %5 : f32 to vector<2x128xf32>
    %36 = arith.mulf %35, %29 : vector<2x128xf32>
    %37 = arith.addf %34, %36 : vector<2x128xf32>
    %38 = vector.broadcast %7 : f32 to vector<2x128xf32>
    %39 = arith.addf %37, %38 : vector<2x128xf32>
    %40 = vector.broadcast %9 : f32 to vector<2x128xf32>
    %41 = arith.mulf %40, %25 : vector<2x128xf32>
    %42 = vector.broadcast %11 : f32 to vector<2x128xf32>
    %43 = arith.mulf %42, %27 : vector<2x128xf32>
    %44 = arith.addf %41, %43 : vector<2x128xf32>
    %45 = vector.broadcast %13 : f32 to vector<2x128xf32>
    %46 = arith.mulf %45, %29 : vector<2x128xf32>
    %47 = arith.addf %44, %46 : vector<2x128xf32>
    %48 = vector.broadcast %15 : f32 to vector<2x128xf32>
    %49 = arith.addf %47, %48 : vector<2x128xf32>
    %50 = vector.broadcast %17 : f32 to vector<2x128xf32>
    %51 = arith.mulf %50, %25 : vector<2x128xf32>
    %52 = vector.broadcast %19 : f32 to vector<2x128xf32>
    %53 = arith.mulf %52, %27 : vector<2x128xf32>
    %54 = arith.addf %51, %53 : vector<2x128xf32>
    %55 = vector.broadcast %21 : f32 to vector<2x128xf32>
    %56 = arith.mulf %55, %29 : vector<2x128xf32>
    %57 = arith.addf %54, %56 : vector<2x128xf32>
    %58 = vector.broadcast %23 : f32 to vector<2x128xf32>
    %59 = arith.addf %57, %58 : vector<2x128xf32>
    %cst = arith.constant 1.000000e+00 : f32
    %60 = vector.broadcast %cst : f32 to vector<2x128xf32>
    %61 = arith.divf %60, %59 : vector<2x128xf32>
    %62 = arith.mulf %39, %61 : vector<2x128xf32>
    %63 = arith.mulf %49, %61 : vector<2x128xf32>
    %c0_15 = arith.constant 0 : index
    %c1_16 = arith.constant 1 : index
    %c0_17 = arith.constant 0 : index
    %c0_18 = arith.constant 0 : index
    %c0_19 = arith.constant 0 : index
    %64 = vector.load %arg2[%c0_15, %c1_16, %c0_17, %c0_18, %c0_19] : memref<1x8x3x2x128xf32, #tpu.memory_space<vmem>>, vector<1x1x1x2x128xf32>
    %65 = vector.shape_cast %64 : vector<1x1x1x2x128xf32> to vector<2x128xf32>
    %c0_20 = arith.constant 0 : index
    %c1_21 = arith.constant 1 : index
    %c1_22 = arith.constant 1 : index
    %c0_23 = arith.constant 0 : index
    %c0_24 = arith.constant 0 : index
    %66 = vector.load %arg2[%c0_20, %c1_21, %c1_22, %c0_23, %c0_24] : memref<1x8x3x2x128xf32, #tpu.memory_space<vmem>>, vector<1x1x1x2x128xf32>
    %67 = vector.shape_cast %66 : vector<1x1x1x2x128xf32> to vector<2x128xf32>
    %c0_25 = arith.constant 0 : index
    %c1_26 = arith.constant 1 : index
    %c2_27 = arith.constant 2 : index
    %c0_28 = arith.constant 0 : index
    %c0_29 = arith.constant 0 : index
    %68 = vector.load %arg2[%c0_25, %c1_26, %c2_27, %c0_28, %c0_29] : memref<1x8x3x2x128xf32, #tpu.memory_space<vmem>>, vector<1x1x1x2x128xf32>
    %69 = vector.shape_cast %68 : vector<1x1x1x2x128xf32> to vector<2x128xf32>
    %70 = vector.broadcast %1 : f32 to vector<2x128xf32>
    %71 = arith.mulf %70, %65 : vector<2x128xf32>
    %72 = vector.broadcast %3 : f32 to vector<2x128xf32>
    %73 = arith.mulf %72, %67 : vector<2x128xf32>
    %74 = arith.addf %71, %73 : vector<2x128xf32>
    %75 = vector.broadcast %5 : f32 to vector<2x128xf32>
    %76 = arith.mulf %75, %69 : vector<2x128xf32>
    %77 = arith.addf %74, %76 : vector<2x128xf32>
    %78 = vector.broadcast %7 : f32 to vector<2x128xf32>
    %79 = arith.addf %77, %78 : vector<2x128xf32>
    %80 = vector.broadcast %9 : f32 to vector<2x128xf32>
    %81 = arith.mulf %80, %65 : vector<2x128xf32>
    %82 = vector.broadcast %11 : f32 to vector<2x128xf32>
    %83 = arith.mulf %82, %67 : vector<2x128xf32>
    %84 = arith.addf %81, %83 : vector<2x128xf32>
    %85 = vector.broadcast %13 : f32 to vector<2x128xf32>
    %86 = arith.mulf %85, %69 : vector<2x128xf32>
    %87 = arith.addf %84, %86 : vector<2x128xf32>
    %88 = vector.broadcast %15 : f32 to vector<2x128xf32>
    %89 = arith.addf %87, %88 : vector<2x128xf32>
    %90 = vector.broadcast %17 : f32 to vector<2x128xf32>
    %91 = arith.mulf %90, %65 : vector<2x128xf32>
    %92 = vector.broadcast %19 : f32 to vector<2x128xf32>
    %93 = arith.mulf %92, %67 : vector<2x128xf32>
    %94 = arith.addf %91, %93 : vector<2x128xf32>
    %95 = vector.broadcast %21 : f32 to vector<2x128xf32>
    %96 = arith.mulf %95, %69 : vector<2x128xf32>
    %97 = arith.addf %94, %96 : vector<2x128xf32>
    %98 = vector.broadcast %23 : f32 to vector<2x128xf32>
    %99 = arith.addf %97, %98 : vector<2x128xf32>
    %cst_30 = arith.constant 1.000000e+00 : f32
    %100 = vector.broadcast %cst_30 : f32 to vector<2x128xf32>
    %101 = arith.divf %100, %99 : vector<2x128xf32>
    %102 = arith.mulf %79, %101 : vector<2x128xf32>
    %103 = arith.mulf %89, %101 : vector<2x128xf32>
    %c0_31 = arith.constant 0 : index
    %c2_32 = arith.constant 2 : index
    %c0_33 = arith.constant 0 : index
    %c0_34 = arith.constant 0 : index
    %c0_35 = arith.constant 0 : index
    %104 = vector.load %arg2[%c0_31, %c2_32, %c0_33, %c0_34, %c0_35] : memref<1x8x3x2x128xf32, #tpu.memory_space<vmem>>, vector<1x1x1x2x128xf32>
    %105 = vector.shape_cast %104 : vector<1x1x1x2x128xf32> to vector<2x128xf32>
    %c0_36 = arith.constant 0 : index
    %c2_37 = arith.constant 2 : index
    %c1_38 = arith.constant 1 : index
    %c0_39 = arith.constant 0 : index
    %c0_40 = arith.constant 0 : index
    %106 = vector.load %arg2[%c0_36, %c2_37, %c1_38, %c0_39, %c0_40] : memref<1x8x3x2x128xf32, #tpu.memory_space<vmem>>, vector<1x1x1x2x128xf32>
    %107 = vector.shape_cast %106 : vector<1x1x1x2x128xf32> to vector<2x128xf32>
    %c0_41 = arith.constant 0 : index
    %c2_42 = arith.constant 2 : index
    %c2_43 = arith.constant 2 : index
    %c0_44 = arith.constant 0 : index
    %c0_45 = arith.constant 0 : index
    %108 = vector.load %arg2[%c0_41, %c2_42, %c2_43, %c0_44, %c0_45] : memref<1x8x3x2x128xf32, #tpu.memory_space<vmem>>, vector<1x1x1x2x128xf32>
    %109 = vector.shape_cast %108 : vector<1x1x1x2x128xf32> to vector<2x128xf32>
    %110 = vector.broadcast %1 : f32 to vector<2x128xf32>
    %111 = arith.mulf %110, %105 : vector<2x128xf32>
    %112 = vector.broadcast %3 : f32 to vector<2x128xf32>
    %113 = arith.mulf %112, %107 : vector<2x128xf32>
    %114 = arith.addf %111, %113 : vector<2x128xf32>
    %115 = vector.broadcast %5 : f32 to vector<2x128xf32>
    %116 = arith.mulf %115, %109 : vector<2x128xf32>
    %117 = arith.addf %114, %116 : vector<2x128xf32>
    %118 = vector.broadcast %7 : f32 to vector<2x128xf32>
    %119 = arith.addf %117, %118 : vector<2x128xf32>
    %120 = vector.broadcast %9 : f32 to vector<2x128xf32>
    %121 = arith.mulf %120, %105 : vector<2x128xf32>
    %122 = vector.broadcast %11 : f32 to vector<2x128xf32>
    %123 = arith.mulf %122, %107 : vector<2x128xf32>
    %124 = arith.addf %121, %123 : vector<2x128xf32>
    %125 = vector.broadcast %13 : f32 to vector<2x128xf32>
    %126 = arith.mulf %125, %109 : vector<2x128xf32>
    %127 = arith.addf %124, %126 : vector<2x128xf32>
    %128 = vector.broadcast %15 : f32 to vector<2x128xf32>
    %129 = arith.addf %127, %128 : vector<2x128xf32>
    %130 = vector.broadcast %17 : f32 to vector<2x128xf32>
    %131 = arith.mulf %130, %105 : vector<2x128xf32>
    %132 = vector.broadcast %19 : f32 to vector<2x128xf32>
    %133 = arith.mulf %132, %107 : vector<2x128xf32>
    %134 = arith.addf %131, %133 : vector<2x128xf32>
    %135 = vector.broadcast %21 : f32 to vector<2x128xf32>
    %136 = arith.mulf %135, %109 : vector<2x128xf32>
    %137 = arith.addf %134, %136 : vector<2x128xf32>
    %138 = vector.broadcast %23 : f32 to vector<2x128xf32>
    %139 = arith.addf %137, %138 : vector<2x128xf32>
    %cst_46 = arith.constant 1.000000e+00 : f32
    %140 = vector.broadcast %cst_46 : f32 to vector<2x128xf32>
    %141 = arith.divf %140, %139 : vector<2x128xf32>
    %142 = arith.mulf %119, %141 : vector<2x128xf32>
    %143 = arith.mulf %129, %141 : vector<2x128xf32>
    %c0_47 = arith.constant 0 : index
    %c3_48 = arith.constant 3 : index
    %c0_49 = arith.constant 0 : index
    %c0_50 = arith.constant 0 : index
    %c0_51 = arith.constant 0 : index
    %144 = vector.load %arg2[%c0_47, %c3_48, %c0_49, %c0_50, %c0_51] : memref<1x8x3x2x128xf32, #tpu.memory_space<vmem>>, vector<1x1x1x2x128xf32>
    %145 = vector.shape_cast %144 : vector<1x1x1x2x128xf32> to vector<2x128xf32>
    %c0_52 = arith.constant 0 : index
    %c3_53 = arith.constant 3 : index
    %c1_54 = arith.constant 1 : index
    %c0_55 = arith.constant 0 : index
    %c0_56 = arith.constant 0 : index
    %146 = vector.load %arg2[%c0_52, %c3_53, %c1_54, %c0_55, %c0_56] : memref<1x8x3x2x128xf32, #tpu.memory_space<vmem>>, vector<1x1x1x2x128xf32>
    %147 = vector.shape_cast %146 : vector<1x1x1x2x128xf32> to vector<2x128xf32>
    %c0_57 = arith.constant 0 : index
    %c3_58 = arith.constant 3 : index
    %c2_59 = arith.constant 2 : index
    %c0_60 = arith.constant 0 : index
    %c0_61 = arith.constant 0 : index
    %148 = vector.load %arg2[%c0_57, %c3_58, %c2_59, %c0_60, %c0_61] : memref<1x8x3x2x128xf32, #tpu.memory_space<vmem>>, vector<1x1x1x2x128xf32>
    %149 = vector.shape_cast %148 : vector<1x1x1x2x128xf32> to vector<2x128xf32>
    %150 = vector.broadcast %1 : f32 to vector<2x128xf32>
    %151 = arith.mulf %150, %145 : vector<2x128xf32>
    %152 = vector.broadcast %3 : f32 to vector<2x128xf32>
    %153 = arith.mulf %152, %147 : vector<2x128xf32>
    %154 = arith.addf %151, %153 : vector<2x128xf32>
    %155 = vector.broadcast %5 : f32 to vector<2x128xf32>
    %156 = arith.mulf %155, %149 : vector<2x128xf32>
    %157 = arith.addf %154, %156 : vector<2x128xf32>
    %158 = vector.broadcast %7 : f32 to vector<2x128xf32>
    %159 = arith.addf %157, %158 : vector<2x128xf32>
    %160 = vector.broadcast %9 : f32 to vector<2x128xf32>
    %161 = arith.mulf %160, %145 : vector<2x128xf32>
    %162 = vector.broadcast %11 : f32 to vector<2x128xf32>
    %163 = arith.mulf %162, %147 : vector<2x128xf32>
    %164 = arith.addf %161, %163 : vector<2x128xf32>
    %165 = vector.broadcast %13 : f32 to vector<2x128xf32>
    %166 = arith.mulf %165, %149 : vector<2x128xf32>
    %167 = arith.addf %164, %166 : vector<2x128xf32>
    %168 = vector.broadcast %15 : f32 to vector<2x128xf32>
    %169 = arith.addf %167, %168 : vector<2x128xf32>
    %170 = vector.broadcast %17 : f32 to vector<2x128xf32>
    %171 = arith.mulf %170, %145 : vector<2x128xf32>
    %172 = vector.broadcast %19 : f32 to vector<2x128xf32>
    %173 = arith.mulf %172, %147 : vector<2x128xf32>
    %174 = arith.addf %171, %173 : vector<2x128xf32>
    %175 = vector.broadcast %21 : f32 to vector<2x128xf32>
    %176 = arith.mulf %175, %149 : vector<2x128xf32>
    %177 = arith.addf %174, %176 : vector<2x128xf32>
    %178 = vector.broadcast %23 : f32 to vector<2x128xf32>
    %179 = arith.addf %177, %178 : vector<2x128xf32>
    %cst_62 = arith.constant 1.000000e+00 : f32
    %180 = vector.broadcast %cst_62 : f32 to vector<2x128xf32>
    %181 = arith.divf %180, %179 : vector<2x128xf32>
    %182 = arith.mulf %159, %181 : vector<2x128xf32>
    %183 = arith.mulf %169, %181 : vector<2x128xf32>
    %c0_63 = arith.constant 0 : index
    %c4_64 = arith.constant 4 : index
    %c0_65 = arith.constant 0 : index
    %c0_66 = arith.constant 0 : index
    %c0_67 = arith.constant 0 : index
    %184 = vector.load %arg2[%c0_63, %c4_64, %c0_65, %c0_66, %c0_67] : memref<1x8x3x2x128xf32, #tpu.memory_space<vmem>>, vector<1x1x1x2x128xf32>
    %185 = vector.shape_cast %184 : vector<1x1x1x2x128xf32> to vector<2x128xf32>
    %c0_68 = arith.constant 0 : index
    %c4_69 = arith.constant 4 : index
    %c1_70 = arith.constant 1 : index
    %c0_71 = arith.constant 0 : index
    %c0_72 = arith.constant 0 : index
    %186 = vector.load %arg2[%c0_68, %c4_69, %c1_70, %c0_71, %c0_72] : memref<1x8x3x2x128xf32, #tpu.memory_space<vmem>>, vector<1x1x1x2x128xf32>
    %187 = vector.shape_cast %186 : vector<1x1x1x2x128xf32> to vector<2x128xf32>
    %c0_73 = arith.constant 0 : index
    %c4_74 = arith.constant 4 : index
    %c2_75 = arith.constant 2 : index
    %c0_76 = arith.constant 0 : index
    %c0_77 = arith.constant 0 : index
    %188 = vector.load %arg2[%c0_73, %c4_74, %c2_75, %c0_76, %c0_77] : memref<1x8x3x2x128xf32, #tpu.memory_space<vmem>>, vector<1x1x1x2x128xf32>
    %189 = vector.shape_cast %188 : vector<1x1x1x2x128xf32> to vector<2x128xf32>
    %190 = vector.broadcast %1 : f32 to vector<2x128xf32>
    %191 = arith.mulf %190, %185 : vector<2x128xf32>
    %192 = vector.broadcast %3 : f32 to vector<2x128xf32>
    %193 = arith.mulf %192, %187 : vector<2x128xf32>
    %194 = arith.addf %191, %193 : vector<2x128xf32>
    %195 = vector.broadcast %5 : f32 to vector<2x128xf32>
    %196 = arith.mulf %195, %189 : vector<2x128xf32>
    %197 = arith.addf %194, %196 : vector<2x128xf32>
    %198 = vector.broadcast %7 : f32 to vector<2x128xf32>
    %199 = arith.addf %197, %198 : vector<2x128xf32>
    %200 = vector.broadcast %9 : f32 to vector<2x128xf32>
    %201 = arith.mulf %200, %185 : vector<2x128xf32>
    %202 = vector.broadcast %11 : f32 to vector<2x128xf32>
    %203 = arith.mulf %202, %187 : vector<2x128xf32>
    %204 = arith.addf %201, %203 : vector<2x128xf32>
    %205 = vector.broadcast %13 : f32 to vector<2x128xf32>
    %206 = arith.mulf %205, %189 : vector<2x128xf32>
    %207 = arith.addf %204, %206 : vector<2x128xf32>
    %208 = vector.broadcast %15 : f32 to vector<2x128xf32>
    %209 = arith.addf %207, %208 : vector<2x128xf32>
    %210 = vector.broadcast %17 : f32 to vector<2x128xf32>
    %211 = arith.mulf %210, %185 : vector<2x128xf32>
    %212 = vector.broadcast %19 : f32 to vector<2x128xf32>
    %213 = arith.mulf %212, %187 : vector<2x128xf32>
    %214 = arith.addf %211, %213 : vector<2x128xf32>
    %215 = vector.broadcast %21 : f32 to vector<2x128xf32>
    %216 = arith.mulf %215, %189 : vector<2x128xf32>
    %217 = arith.addf %214, %216 : vector<2x128xf32>
    %218 = vector.broadcast %23 : f32 to vector<2x128xf32>
    %219 = arith.addf %217, %218 : vector<2x128xf32>
    %cst_78 = arith.constant 1.000000e+00 : f32
    %220 = vector.broadcast %cst_78 : f32 to vector<2x128xf32>
    %221 = arith.divf %220, %219 : vector<2x128xf32>
    %222 = arith.mulf %199, %221 : vector<2x128xf32>
    %223 = arith.mulf %209, %221 : vector<2x128xf32>
    %c0_79 = arith.constant 0 : index
    %c5_80 = arith.constant 5 : index
    %c0_81 = arith.constant 0 : index
    %c0_82 = arith.constant 0 : index
    %c0_83 = arith.constant 0 : index
    %224 = vector.load %arg2[%c0_79, %c5_80, %c0_81, %c0_82, %c0_83] : memref<1x8x3x2x128xf32, #tpu.memory_space<vmem>>, vector<1x1x1x2x128xf32>
    %225 = vector.shape_cast %224 : vector<1x1x1x2x128xf32> to vector<2x128xf32>
    %c0_84 = arith.constant 0 : index
    %c5_85 = arith.constant 5 : index
    %c1_86 = arith.constant 1 : index
    %c0_87 = arith.constant 0 : index
    %c0_88 = arith.constant 0 : index
    %226 = vector.load %arg2[%c0_84, %c5_85, %c1_86, %c0_87, %c0_88] : memref<1x8x3x2x128xf32, #tpu.memory_space<vmem>>, vector<1x1x1x2x128xf32>
    %227 = vector.shape_cast %226 : vector<1x1x1x2x128xf32> to vector<2x128xf32>
    %c0_89 = arith.constant 0 : index
    %c5_90 = arith.constant 5 : index
    %c2_91 = arith.constant 2 : index
    %c0_92 = arith.constant 0 : index
    %c0_93 = arith.constant 0 : index
    %228 = vector.load %arg2[%c0_89, %c5_90, %c2_91, %c0_92, %c0_93] : memref<1x8x3x2x128xf32, #tpu.memory_space<vmem>>, vector<1x1x1x2x128xf32>
    %229 = vector.shape_cast %228 : vector<1x1x1x2x128xf32> to vector<2x128xf32>
    %230 = vector.broadcast %1 : f32 to vector<2x128xf32>
    %231 = arith.mulf %230, %225 : vector<2x128xf32>
    %232 = vector.broadcast %3 : f32 to vector<2x128xf32>
    %233 = arith.mulf %232, %227 : vector<2x128xf32>
    %234 = arith.addf %231, %233 : vector<2x128xf32>
    %235 = vector.broadcast %5 : f32 to vector<2x128xf32>
    %236 = arith.mulf %235, %229 : vector<2x128xf32>
    %237 = arith.addf %234, %236 : vector<2x128xf32>
    %238 = vector.broadcast %7 : f32 to vector<2x128xf32>
    %239 = arith.addf %237, %238 : vector<2x128xf32>
    %240 = vector.broadcast %9 : f32 to vector<2x128xf32>
    %241 = arith.mulf %240, %225 : vector<2x128xf32>
    %242 = vector.broadcast %11 : f32 to vector<2x128xf32>
    %243 = arith.mulf %242, %227 : vector<2x128xf32>
    %244 = arith.addf %241, %243 : vector<2x128xf32>
    %245 = vector.broadcast %13 : f32 to vector<2x128xf32>
    %246 = arith.mulf %245, %229 : vector<2x128xf32>
    %247 = arith.addf %244, %246 : vector<2x128xf32>
    %248 = vector.broadcast %15 : f32 to vector<2x128xf32>
    %249 = arith.addf %247, %248 : vector<2x128xf32>
    %250 = vector.broadcast %17 : f32 to vector<2x128xf32>
    %251 = arith.mulf %250, %225 : vector<2x128xf32>
    %252 = vector.broadcast %19 : f32 to vector<2x128xf32>
    %253 = arith.mulf %252, %227 : vector<2x128xf32>
    %254 = arith.addf %251, %253 : vector<2x128xf32>
    %255 = vector.broadcast %21 : f32 to vector<2x128xf32>
    %256 = arith.mulf %255, %229 : vector<2x128xf32>
    %257 = arith.addf %254, %256 : vector<2x128xf32>
    %258 = vector.broadcast %23 : f32 to vector<2x128xf32>
    %259 = arith.addf %257, %258 : vector<2x128xf32>
    %cst_94 = arith.constant 1.000000e+00 : f32
    %260 = vector.broadcast %cst_94 : f32 to vector<2x128xf32>
    %261 = arith.divf %260, %259 : vector<2x128xf32>
    %262 = arith.mulf %239, %261 : vector<2x128xf32>
    %263 = arith.mulf %249, %261 : vector<2x128xf32>
    %c0_95 = arith.constant 0 : index
    %c6_96 = arith.constant 6 : index
    %c0_97 = arith.constant 0 : index
    %c0_98 = arith.constant 0 : index
    %c0_99 = arith.constant 0 : index
    %264 = vector.load %arg2[%c0_95, %c6_96, %c0_97, %c0_98, %c0_99] : memref<1x8x3x2x128xf32, #tpu.memory_space<vmem>>, vector<1x1x1x2x128xf32>
    %265 = vector.shape_cast %264 : vector<1x1x1x2x128xf32> to vector<2x128xf32>
    %c0_100 = arith.constant 0 : index
    %c6_101 = arith.constant 6 : index
    %c1_102 = arith.constant 1 : index
    %c0_103 = arith.constant 0 : index
    %c0_104 = arith.constant 0 : index
    %266 = vector.load %arg2[%c0_100, %c6_101, %c1_102, %c0_103, %c0_104] : memref<1x8x3x2x128xf32, #tpu.memory_space<vmem>>, vector<1x1x1x2x128xf32>
    %267 = vector.shape_cast %266 : vector<1x1x1x2x128xf32> to vector<2x128xf32>
    %c0_105 = arith.constant 0 : index
    %c6_106 = arith.constant 6 : index
    %c2_107 = arith.constant 2 : index
    %c0_108 = arith.constant 0 : index
    %c0_109 = arith.constant 0 : index
    %268 = vector.load %arg2[%c0_105, %c6_106, %c2_107, %c0_108, %c0_109] : memref<1x8x3x2x128xf32, #tpu.memory_space<vmem>>, vector<1x1x1x2x128xf32>
    %269 = vector.shape_cast %268 : vector<1x1x1x2x128xf32> to vector<2x128xf32>
    %270 = vector.broadcast %1 : f32 to vector<2x128xf32>
    %271 = arith.mulf %270, %265 : vector<2x128xf32>
    %272 = vector.broadcast %3 : f32 to vector<2x128xf32>
    %273 = arith.mulf %272, %267 : vector<2x128xf32>
    %274 = arith.addf %271, %273 : vector<2x128xf32>
    %275 = vector.broadcast %5 : f32 to vector<2x128xf32>
    %276 = arith.mulf %275, %269 : vector<2x128xf32>
    %277 = arith.addf %274, %276 : vector<2x128xf32>
    %278 = vector.broadcast %7 : f32 to vector<2x128xf32>
    %279 = arith.addf %277, %278 : vector<2x128xf32>
    %280 = vector.broadcast %9 : f32 to vector<2x128xf32>
    %281 = arith.mulf %280, %265 : vector<2x128xf32>
    %282 = vector.broadcast %11 : f32 to vector<2x128xf32>
    %283 = arith.mulf %282, %267 : vector<2x128xf32>
    %284 = arith.addf %281, %283 : vector<2x128xf32>
    %285 = vector.broadcast %13 : f32 to vector<2x128xf32>
    %286 = arith.mulf %285, %269 : vector<2x128xf32>
    %287 = arith.addf %284, %286 : vector<2x128xf32>
    %288 = vector.broadcast %15 : f32 to vector<2x128xf32>
    %289 = arith.addf %287, %288 : vector<2x128xf32>
    %290 = vector.broadcast %17 : f32 to vector<2x128xf32>
    %291 = arith.mulf %290, %265 : vector<2x128xf32>
    %292 = vector.broadcast %19 : f32 to vector<2x128xf32>
    %293 = arith.mulf %292, %267 : vector<2x128xf32>
    %294 = arith.addf %291, %293 : vector<2x128xf32>
    %295 = vector.broadcast %21 : f32 to vector<2x128xf32>
    %296 = arith.mulf %295, %269 : vector<2x128xf32>
    %297 = arith.addf %294, %296 : vector<2x128xf32>
    %298 = vector.broadcast %23 : f32 to vector<2x128xf32>
    %299 = arith.addf %297, %298 : vector<2x128xf32>
    %cst_110 = arith.constant 1.000000e+00 : f32
    %300 = vector.broadcast %cst_110 : f32 to vector<2x128xf32>
    %301 = arith.divf %300, %299 : vector<2x128xf32>
    %302 = arith.mulf %279, %301 : vector<2x128xf32>
    %303 = arith.mulf %289, %301 : vector<2x128xf32>
    %c0_111 = arith.constant 0 : index
    %c7_112 = arith.constant 7 : index
    %c0_113 = arith.constant 0 : index
    %c0_114 = arith.constant 0 : index
    %c0_115 = arith.constant 0 : index
    %304 = vector.load %arg2[%c0_111, %c7_112, %c0_113, %c0_114, %c0_115] : memref<1x8x3x2x128xf32, #tpu.memory_space<vmem>>, vector<1x1x1x2x128xf32>
    %305 = vector.shape_cast %304 : vector<1x1x1x2x128xf32> to vector<2x128xf32>
    %c0_116 = arith.constant 0 : index
    %c7_117 = arith.constant 7 : index
    %c1_118 = arith.constant 1 : index
    %c0_119 = arith.constant 0 : index
    %c0_120 = arith.constant 0 : index
    %306 = vector.load %arg2[%c0_116, %c7_117, %c1_118, %c0_119, %c0_120] : memref<1x8x3x2x128xf32, #tpu.memory_space<vmem>>, vector<1x1x1x2x128xf32>
    %307 = vector.shape_cast %306 : vector<1x1x1x2x128xf32> to vector<2x128xf32>
    %c0_121 = arith.constant 0 : index
    %c7_122 = arith.constant 7 : index
    %c2_123 = arith.constant 2 : index
    %c0_124 = arith.constant 0 : index
    %c0_125 = arith.constant 0 : index
    %308 = vector.load %arg2[%c0_121, %c7_122, %c2_123, %c0_124, %c0_125] : memref<1x8x3x2x128xf32, #tpu.memory_space<vmem>>, vector<1x1x1x2x128xf32>
    %309 = vector.shape_cast %308 : vector<1x1x1x2x128xf32> to vector<2x128xf32>
    %310 = vector.broadcast %1 : f32 to vector<2x128xf32>
    %311 = arith.mulf %310, %305 : vector<2x128xf32>
    %312 = vector.broadcast %3 : f32 to vector<2x128xf32>
    %313 = arith.mulf %312, %307 : vector<2x128xf32>
    %314 = arith.addf %311, %313 : vector<2x128xf32>
    %315 = vector.broadcast %5 : f32 to vector<2x128xf32>
    %316 = arith.mulf %315, %309 : vector<2x128xf32>
    %317 = arith.addf %314, %316 : vector<2x128xf32>
    %318 = vector.broadcast %7 : f32 to vector<2x128xf32>
    %319 = arith.addf %317, %318 : vector<2x128xf32>
    %320 = vector.broadcast %9 : f32 to vector<2x128xf32>
    %321 = arith.mulf %320, %305 : vector<2x128xf32>
    %322 = vector.broadcast %11 : f32 to vector<2x128xf32>
    %323 = arith.mulf %322, %307 : vector<2x128xf32>
    %324 = arith.addf %321, %323 : vector<2x128xf32>
    %325 = vector.broadcast %13 : f32 to vector<2x128xf32>
    %326 = arith.mulf %325, %309 : vector<2x128xf32>
    %327 = arith.addf %324, %326 : vector<2x128xf32>
    %328 = vector.broadcast %15 : f32 to vector<2x128xf32>
    %329 = arith.addf %327, %328 : vector<2x128xf32>
    %330 = vector.broadcast %17 : f32 to vector<2x128xf32>
    %331 = arith.mulf %330, %305 : vector<2x128xf32>
    %332 = vector.broadcast %19 : f32 to vector<2x128xf32>
    %333 = arith.mulf %332, %307 : vector<2x128xf32>
    %334 = arith.addf %331, %333 : vector<2x128xf32>
    %335 = vector.broadcast %21 : f32 to vector<2x128xf32>
    %336 = arith.mulf %335, %309 : vector<2x128xf32>
    %337 = arith.addf %334, %336 : vector<2x128xf32>
    %338 = vector.broadcast %23 : f32 to vector<2x128xf32>
    %339 = arith.addf %337, %338 : vector<2x128xf32>
    %cst_126 = arith.constant 1.000000e+00 : f32
    %340 = vector.broadcast %cst_126 : f32 to vector<2x128xf32>
    %341 = arith.divf %340, %339 : vector<2x128xf32>
    %342 = arith.mulf %319, %341 : vector<2x128xf32>
    %343 = arith.mulf %329, %341 : vector<2x128xf32>
    %true = arith.constant true
    %344 = vector.broadcast %true : i1 to vector<2x128xi1>
    %true_127 = arith.constant true
    %345 = vector.broadcast %true_127 : i1 to vector<2x128xi1>
    %true_128 = arith.constant true
    %346 = vector.broadcast %true_128 : i1 to vector<2x128xi1>
    %true_129 = arith.constant true
    %347 = vector.broadcast %true_129 : i1 to vector<2x128xi1>
    %true_130 = arith.constant true
    %348 = vector.broadcast %true_130 : i1 to vector<2x128xi1>
    %true_131 = arith.constant true
    %349 = vector.broadcast %true_131 : i1 to vector<2x128xi1>
    %true_132 = arith.constant true
    %350 = vector.broadcast %true_132 : i1 to vector<2x128xi1>
    %true_133 = arith.constant true
    %351 = vector.broadcast %true_133 : i1 to vector<2x128xi1>
    %c0_i32 = arith.constant 0 : i32
    %352 = vector.broadcast %c0_i32 : i32 to vector<2x128xi32>
    %c8_i32 = arith.constant 8 : i32
    %353 = vector.broadcast %c8_i32 : i32 to vector<2x128xi32>
    %c7_i32 = arith.constant 7 : i32
    %354 = vector.broadcast %c7_i32 : i32 to vector<2x128xi32>
    %355 = arith.select %351, %354, %353 : vector<2x128xi1>, vector<2x128xi32>
    %c6_i32 = arith.constant 6 : i32
    %356 = vector.broadcast %c6_i32 : i32 to vector<2x128xi32>
    %357 = arith.select %350, %356, %355 : vector<2x128xi1>, vector<2x128xi32>
    %c5_i32 = arith.constant 5 : i32
    %358 = vector.broadcast %c5_i32 : i32 to vector<2x128xi32>
    %359 = arith.select %349, %358, %357 : vector<2x128xi1>, vector<2x128xi32>
    %c4_i32 = arith.constant 4 : i32
    %360 = vector.broadcast %c4_i32 : i32 to vector<2x128xi32>
    %361 = arith.select %348, %360, %359 : vector<2x128xi1>, vector<2x128xi32>
    %c3_i32 = arith.constant 3 : i32
    %362 = vector.broadcast %c3_i32 : i32 to vector<2x128xi32>
    %363 = arith.select %347, %362, %361 : vector<2x128xi1>, vector<2x128xi32>
    %c2_i32 = arith.constant 2 : i32
    %364 = vector.broadcast %c2_i32 : i32 to vector<2x128xi32>
    %365 = arith.select %346, %364, %363 : vector<2x128xi1>, vector<2x128xi32>
    %c1_i32 = arith.constant 1 : i32
    %366 = vector.broadcast %c1_i32 : i32 to vector<2x128xi32>
    %367 = arith.select %345, %366, %365 : vector<2x128xi1>, vector<2x128xi32>
    %c0_i32_134 = arith.constant 0 : i32
    %368 = vector.broadcast %c0_i32_134 : i32 to vector<2x128xi32>
    %369 = arith.select %344, %368, %367 : vector<2x128xi1>, vector<2x128xi32>
    %c8_i32_135 = arith.constant 8 : i32
    %370 = vector.broadcast %c8_i32_135 : i32 to vector<2x128xi32>
    %371 = arith.cmpi slt, %369, %370 : vector<2x128xi32>
    %372 = arith.select %371, %369, %352 : vector<2x128xi1>, vector<2x128xi32>
    %cst_136 = arith.constant 0.000000e+00 : f32
    %373 = vector.broadcast %cst_136 : f32 to vector<2x128xf32>
    %cst_137 = arith.constant 0.000000e+00 : f32
    %374 = vector.broadcast %cst_137 : f32 to vector<2x128xf32>
    %c0_i32_138 = arith.constant 0 : i32
    %375 = vector.broadcast %c0_i32_138 : i32 to vector<2x128xi32>
    %376 = arith.cmpi eq, %372, %375 : vector<2x128xi32>
    %377 = arith.select %376, %62, %373 : vector<2x128xi1>, vector<2x128xf32>
    %378 = arith.select %376, %63, %374 : vector<2x128xi1>, vector<2x128xf32>
    %c1_i32_139 = arith.constant 1 : i32
    %379 = vector.broadcast %c1_i32_139 : i32 to vector<2x128xi32>
    %380 = arith.cmpi eq, %372, %379 : vector<2x128xi32>
    %381 = arith.select %380, %102, %377 : vector<2x128xi1>, vector<2x128xf32>
    %382 = arith.select %380, %103, %378 : vector<2x128xi1>, vector<2x128xf32>
    %c2_i32_140 = arith.constant 2 : i32
    %383 = vector.broadcast %c2_i32_140 : i32 to vector<2x128xi32>
    %384 = arith.cmpi eq, %372, %383 : vector<2x128xi32>
    %385 = arith.select %384, %142, %381 : vector<2x128xi1>, vector<2x128xf32>
    %386 = arith.select %384, %143, %382 : vector<2x128xi1>, vector<2x128xf32>
    %c3_i32_141 = arith.constant 3 : i32
    %387 = vector.broadcast %c3_i32_141 : i32 to vector<2x128xi32>
    %388 = arith.cmpi eq, %372, %387 : vector<2x128xi32>
    %389 = arith.select %388, %182, %385 : vector<2x128xi1>, vector<2x128xf32>
    %390 = arith.select %388, %183, %386 : vector<2x128xi1>, vector<2x128xf32>
    %c4_i32_142 = arith.constant 4 : i32
    %391 = vector.broadcast %c4_i32_142 : i32 to vector<2x128xi32>
    %392 = arith.cmpi eq, %372, %391 : vector<2x128xi32>
    %393 = arith.select %392, %222, %389 : vector<2x128xi1>, vector<2x128xf32>
    %394 = arith.select %392, %223, %390 : vector<2x128xi1>, vector<2x128xf32>
    %c5_i32_143 = arith.constant 5 : i32
    %395 = vector.broadcast %c5_i32_143 : i32 to vector<2x128xi32>
    %396 = arith.cmpi eq, %372, %395 : vector<2x128xi32>
    %397 = arith.select %396, %262, %393 : vector<2x128xi1>, vector<2x128xf32>
    %398 = arith.select %396, %263, %394 : vector<2x128xi1>, vector<2x128xf32>
    %c6_i32_144 = arith.constant 6 : i32
    %399 = vector.broadcast %c6_i32_144 : i32 to vector<2x128xi32>
    %400 = arith.cmpi eq, %372, %399 : vector<2x128xi32>
    %401 = arith.select %400, %302, %397 : vector<2x128xi1>, vector<2x128xf32>
    %402 = arith.select %400, %303, %398 : vector<2x128xi1>, vector<2x128xf32>
    %c7_i32_145 = arith.constant 7 : i32
    %403 = vector.broadcast %c7_i32_145 : i32 to vector<2x128xi32>
    %404 = arith.cmpi eq, %372, %403 : vector<2x128xi32>
    %405 = arith.select %404, %342, %401 : vector<2x128xi1>, vector<2x128xf32>
    %406 = arith.select %404, %343, %402 : vector<2x128xi1>, vector<2x128xf32>
    %407 = arith.subf %62, %405 : vector<2x128xf32>
    %408 = arith.mulf %407, %407 : vector<2x128xf32>
    %409 = arith.subf %63, %406 : vector<2x128xf32>
    %410 = arith.mulf %409, %409 : vector<2x128xf32>
    %411 = arith.addf %408, %410 : vector<2x128xf32>
    %cst_146 = arith.constant 2.500000e-01 : f32
    %412 = vector.broadcast %cst_146 : f32 to vector<2x128xf32>
    %413 = arith.cmpf ogt, %411, %412 : vector<2x128xf32>
    %414 = arith.andi %344, %413 : vector<2x128xi1>
    %415 = arith.subf %102, %405 : vector<2x128xf32>
    %416 = arith.mulf %415, %415 : vector<2x128xf32>
    %417 = arith.subf %103, %406 : vector<2x128xf32>
    %418 = arith.mulf %417, %417 : vector<2x128xf32>
    %419 = arith.addf %416, %418 : vector<2x128xf32>
    %cst_147 = arith.constant 2.500000e-01 : f32
    %420 = vector.broadcast %cst_147 : f32 to vector<2x128xf32>
    %421 = arith.cmpf ogt, %419, %420 : vector<2x128xf32>
    %422 = arith.andi %345, %421 : vector<2x128xi1>
    %423 = arith.subf %142, %405 : vector<2x128xf32>
    %424 = arith.mulf %423, %423 : vector<2x128xf32>
    %425 = arith.subf %143, %406 : vector<2x128xf32>
    %426 = arith.mulf %425, %425 : vector<2x128xf32>
    %427 = arith.addf %424, %426 : vector<2x128xf32>
    %cst_148 = arith.constant 2.500000e-01 : f32
    %428 = vector.broadcast %cst_148 : f32 to vector<2x128xf32>
    %429 = arith.cmpf ogt, %427, %428 : vector<2x128xf32>
    %430 = arith.andi %346, %429 : vector<2x128xi1>
    %431 = arith.subf %182, %405 : vector<2x128xf32>
    %432 = arith.mulf %431, %431 : vector<2x128xf32>
    %433 = arith.subf %183, %406 : vector<2x128xf32>
    %434 = arith.mulf %433, %433 : vector<2x128xf32>
    %435 = arith.addf %432, %434 : vector<2x128xf32>
    %cst_149 = arith.constant 2.500000e-01 : f32
    %436 = vector.broadcast %cst_149 : f32 to vector<2x128xf32>
    %437 = arith.cmpf ogt, %435, %436 : vector<2x128xf32>
    %438 = arith.andi %347, %437 : vector<2x128xi1>
    %439 = arith.subf %222, %405 : vector<2x128xf32>
    %440 = arith.mulf %439, %439 : vector<2x128xf32>
    %441 = arith.subf %223, %406 : vector<2x128xf32>
    %442 = arith.mulf %441, %441 : vector<2x128xf32>
    %443 = arith.addf %440, %442 : vector<2x128xf32>
    %cst_150 = arith.constant 2.500000e-01 : f32
    %444 = vector.broadcast %cst_150 : f32 to vector<2x128xf32>
    %445 = arith.cmpf ogt, %443, %444 : vector<2x128xf32>
    %446 = arith.andi %348, %445 : vector<2x128xi1>
    %447 = arith.subf %262, %405 : vector<2x128xf32>
    %448 = arith.mulf %447, %447 : vector<2x128xf32>
    %449 = arith.subf %263, %406 : vector<2x128xf32>
    %450 = arith.mulf %449, %449 : vector<2x128xf32>
    %451 = arith.addf %448, %450 : vector<2x128xf32>
    %cst_151 = arith.constant 2.500000e-01 : f32
    %452 = vector.broadcast %cst_151 : f32 to vector<2x128xf32>
    %453 = arith.cmpf ogt, %451, %452 : vector<2x128xf32>
    %454 = arith.andi %349, %453 : vector<2x128xi1>
    %455 = arith.subf %302, %405 : vector<2x128xf32>
    %456 = arith.mulf %455, %455 : vector<2x128xf32>
    %457 = arith.subf %303, %406 : vector<2x128xf32>
    %458 = arith.mulf %457, %457 : vector<2x128xf32>
    %459 = arith.addf %456, %458 : vector<2x128xf32>
    %cst_152 = arith.constant 2.500000e-01 : f32
    %460 = vector.broadcast %cst_152 : f32 to vector<2x128xf32>
    %461 = arith.cmpf ogt, %459, %460 : vector<2x128xf32>
    %462 = arith.andi %350, %461 : vector<2x128xi1>
    %463 = arith.subf %342, %405 : vector<2x128xf32>
    %464 = arith.mulf %463, %463 : vector<2x128xf32>
    %465 = arith.subf %343, %406 : vector<2x128xf32>
    %466 = arith.mulf %465, %465 : vector<2x128xf32>
    %467 = arith.addf %464, %466 : vector<2x128xf32>
    %cst_153 = arith.constant 2.500000e-01 : f32
    %468 = vector.broadcast %cst_153 : f32 to vector<2x128xf32>
    %469 = arith.cmpf ogt, %467, %468 : vector<2x128xf32>
    %470 = arith.andi %351, %469 : vector<2x128xi1>
    %c0_154 = arith.constant 0 : index
    %c0_155 = arith.constant 0 : index
    %c0_156 = arith.constant 0 : index
    %c0_157 = arith.constant 0 : index
    %471 = vector.load %arg4[%c0_154, %c0_155, %c0_156, %c0_157] : memref<1x3x2x128xi32, #tpu.memory_space<vmem>>, vector<1x1x2x128xi32>
    %472 = vector.shape_cast %471 : vector<1x1x2x128xi32> to vector<2x128xi32>
    %473 = vector.shape_cast %372 : vector<2x128xi32> to vector<1x1x2x128xi32>
    tpu.vector_store %arg4[%c0_154, %c0_155, %c0_156, %c0_157], %473 {strides = array<i32>} : memref<1x3x2x128xi32, #tpu.memory_space<vmem>>, vector<1x1x2x128xi32>,
    %c8_i32_158 = arith.constant 8 : i32
    %474 = vector.broadcast %c8_i32_158 : i32 to vector<2x128xi32>
    %c7_i32_159 = arith.constant 7 : i32
    %475 = vector.broadcast %c7_i32_159 : i32 to vector<2x128xi32>
    %476 = arith.select %470, %475, %474 : vector<2x128xi1>, vector<2x128xi32>
    %c6_i32_160 = arith.constant 6 : i32
    %477 = vector.broadcast %c6_i32_160 : i32 to vector<2x128xi32>
    %478 = arith.select %462, %477, %476 : vector<2x128xi1>, vector<2x128xi32>
    %c5_i32_161 = arith.constant 5 : i32
    %479 = vector.broadcast %c5_i32_161 : i32 to vector<2x128xi32>
    %480 = arith.select %454, %479, %478 : vector<2x128xi1>, vector<2x128xi32>
    %c4_i32_162 = arith.constant 4 : i32
    %481 = vector.broadcast %c4_i32_162 : i32 to vector<2x128xi32>
    %482 = arith.select %446, %481, %480 : vector<2x128xi1>, vector<2x128xi32>
    %c3_i32_163 = arith.constant 3 : i32
    %483 = vector.broadcast %c3_i32_163 : i32 to vector<2x128xi32>
    %484 = arith.select %438, %483, %482 : vector<2x128xi1>, vector<2x128xi32>
    %c2_i32_164 = arith.constant 2 : i32
    %485 = vector.broadcast %c2_i32_164 : i32 to vector<2x128xi32>
    %486 = arith.select %430, %485, %484 : vector<2x128xi1>, vector<2x128xi32>
    %c1_i32_165 = arith.constant 1 : i32
    %487 = vector.broadcast %c1_i32_165 : i32 to vector<2x128xi32>
    %488 = arith.select %422, %487, %486 : vector<2x128xi1>, vector<2x128xi32>
    %c0_i32_166 = arith.constant 0 : i32
    %489 = vector.broadcast %c0_i32_166 : i32 to vector<2x128xi32>
    %490 = arith.select %414, %489, %488 : vector<2x128xi1>, vector<2x128xi32>
    %c8_i32_167 = arith.constant 8 : i32
    %491 = vector.broadcast %c8_i32_167 : i32 to vector<2x128xi32>
    %492 = arith.cmpi slt, %490, %491 : vector<2x128xi32>
    %493 = arith.select %492, %490, %372 : vector<2x128xi1>, vector<2x128xi32>
    %cst_168 = arith.constant 0.000000e+00 : f32
    %494 = vector.broadcast %cst_168 : f32 to vector<2x128xf32>
    %cst_169 = arith.constant 0.000000e+00 : f32
    %495 = vector.broadcast %cst_169 : f32 to vector<2x128xf32>
    %c0_i32_170 = arith.constant 0 : i32
    %496 = vector.broadcast %c0_i32_170 : i32 to vector<2x128xi32>
    %497 = arith.cmpi eq, %493, %496 : vector<2x128xi32>
    %498 = arith.select %497, %62, %494 : vector<2x128xi1>, vector<2x128xf32>
    %499 = arith.select %497, %63, %495 : vector<2x128xi1>, vector<2x128xf32>
    %c1_i32_171 = arith.constant 1 : i32
    %500 = vector.broadcast %c1_i32_171 : i32 to vector<2x128xi32>
    %501 = arith.cmpi eq, %493, %500 : vector<2x128xi32>
    %502 = arith.select %501, %102, %498 : vector<2x128xi1>, vector<2x128xf32>
    %503 = arith.select %501, %103, %499 : vector<2x128xi1>, vector<2x128xf32>
    %c2_i32_172 = arith.constant 2 : i32
    %504 = vector.broadcast %c2_i32_172 : i32 to vector<2x128xi32>
    %505 = arith.cmpi eq, %493, %504 : vector<2x128xi32>
    %506 = arith.select %505, %142, %502 : vector<2x128xi1>, vector<2x128xf32>
    %507 = arith.select %505, %143, %503 : vector<2x128xi1>, vector<2x128xf32>
    %c3_i32_173 = arith.constant 3 : i32
    %508 = vector.broadcast %c3_i32_173 : i32 to vector<2x128xi32>
    %509 = arith.cmpi eq, %493, %508 : vector<2x128xi32>
    %510 = arith.select %509, %182, %506 : vector<2x128xi1>, vector<2x128xf32>
    %511 = arith.select %509, %183, %507 : vector<2x128xi1>, vector<2x128xf32>
    %c4_i32_174 = arith.constant 4 : i32
    %512 = vector.broadcast %c4_i32_174 : i32 to vector<2x128xi32>
    %513 = arith.cmpi eq, %493, %512 : vector<2x128xi32>
    %514 = arith.select %513, %222, %510 : vector<2x128xi1>, vector<2x128xf32>
    %515 = arith.select %513, %223, %511 : vector<2x128xi1>, vector<2x128xf32>
    %c5_i32_175 = arith.constant 5 : i32
    %516 = vector.broadcast %c5_i32_175 : i32 to vector<2x128xi32>
    %517 = arith.cmpi eq, %493, %516 : vector<2x128xi32>
    %518 = arith.select %517, %262, %514 : vector<2x128xi1>, vector<2x128xf32>
    %519 = arith.select %517, %263, %515 : vector<2x128xi1>, vector<2x128xf32>
    %c6_i32_176 = arith.constant 6 : i32
    %520 = vector.broadcast %c6_i32_176 : i32 to vector<2x128xi32>
    %521 = arith.cmpi eq, %493, %520 : vector<2x128xi32>
    %522 = arith.select %521, %302, %518 : vector<2x128xi1>, vector<2x128xf32>
    %523 = arith.select %521, %303, %519 : vector<2x128xi1>, vector<2x128xf32>
    %c7_i32_177 = arith.constant 7 : i32
    %524 = vector.broadcast %c7_i32_177 : i32 to vector<2x128xi32>
    %525 = arith.cmpi eq, %493, %524 : vector<2x128xi32>
    %526 = arith.select %525, %342, %522 : vector<2x128xi1>, vector<2x128xf32>
    %527 = arith.select %525, %343, %523 : vector<2x128xi1>, vector<2x128xf32>
    %528 = arith.subf %62, %526 : vector<2x128xf32>
    %529 = arith.mulf %528, %528 : vector<2x128xf32>
    %530 = arith.subf %63, %527 : vector<2x128xf32>
    %531 = arith.mulf %530, %530 : vector<2x128xf32>
    %532 = arith.addf %529, %531 : vector<2x128xf32>
    %cst_178 = arith.constant 2.500000e-01 : f32
    %533 = vector.broadcast %cst_178 : f32 to vector<2x128xf32>
    %534 = arith.cmpf ogt, %532, %533 : vector<2x128xf32>
    %535 = arith.andi %414, %534 : vector<2x128xi1>
    %536 = arith.subf %102, %526 : vector<2x128xf32>
    %537 = arith.mulf %536, %536 : vector<2x128xf32>
    %538 = arith.subf %103, %527 : vector<2x128xf32>
    %539 = arith.mulf %538, %538 : vector<2x128xf32>
    %540 = arith.addf %537, %539 : vector<2x128xf32>
    %cst_179 = arith.constant 2.500000e-01 : f32
    %541 = vector.broadcast %cst_179 : f32 to vector<2x128xf32>
    %542 = arith.cmpf ogt, %540, %541 : vector<2x128xf32>
    %543 = arith.andi %422, %542 : vector<2x128xi1>
    %544 = arith.subf %142, %526 : vector<2x128xf32>
    %545 = arith.mulf %544, %544 : vector<2x128xf32>
    %546 = arith.subf %143, %527 : vector<2x128xf32>
    %547 = arith.mulf %546, %546 : vector<2x128xf32>
    %548 = arith.addf %545, %547 : vector<2x128xf32>
    %cst_180 = arith.constant 2.500000e-01 : f32
    %549 = vector.broadcast %cst_180 : f32 to vector<2x128xf32>
    %550 = arith.cmpf ogt, %548, %549 : vector<2x128xf32>
    %551 = arith.andi %430, %550 : vector<2x128xi1>
    %552 = arith.subf %182, %526 : vector<2x128xf32>
    %553 = arith.mulf %552, %552 : vector<2x128xf32>
    %554 = arith.subf %183, %527 : vector<2x128xf32>
    %555 = arith.mulf %554, %554 : vector<2x128xf32>
    %556 = arith.addf %553, %555 : vector<2x128xf32>
    %cst_181 = arith.constant 2.500000e-01 : f32
    %557 = vector.broadcast %cst_181 : f32 to vector<2x128xf32>
    %558 = arith.cmpf ogt, %556, %557 : vector<2x128xf32>
    %559 = arith.andi %438, %558 : vector<2x128xi1>
    %560 = arith.subf %222, %526 : vector<2x128xf32>
    %561 = arith.mulf %560, %560 : vector<2x128xf32>
    %562 = arith.subf %223, %527 : vector<2x128xf32>
    %563 = arith.mulf %562, %562 : vector<2x128xf32>
    %564 = arith.addf %561, %563 : vector<2x128xf32>
    %cst_182 = arith.constant 2.500000e-01 : f32
    %565 = vector.broadcast %cst_182 : f32 to vector<2x128xf32>
    %566 = arith.cmpf ogt, %564, %565 : vector<2x128xf32>
    %567 = arith.andi %446, %566 : vector<2x128xi1>
    %568 = arith.subf %262, %526 : vector<2x128xf32>
    %569 = arith.mulf %568, %568 : vector<2x128xf32>
    %570 = arith.subf %263, %527 : vector<2x128xf32>
    %571 = arith.mulf %570, %570 : vector<2x128xf32>
    %572 = arith.addf %569, %571 : vector<2x128xf32>
    %cst_183 = arith.constant 2.500000e-01 : f32
    %573 = vector.broadcast %cst_183 : f32 to vector<2x128xf32>
    %574 = arith.cmpf ogt, %572, %573 : vector<2x128xf32>
    %575 = arith.andi %454, %574 : vector<2x128xi1>
    %576 = arith.subf %302, %526 : vector<2x128xf32>
    %577 = arith.mulf %576, %576 : vector<2x128xf32>
    %578 = arith.subf %303, %527 : vector<2x128xf32>
    %579 = arith.mulf %578, %578 : vector<2x128xf32>
    %580 = arith.addf %577, %579 : vector<2x128xf32>
    %cst_184 = arith.constant 2.500000e-01 : f32
    %581 = vector.broadcast %cst_184 : f32 to vector<2x128xf32>
    %582 = arith.cmpf ogt, %580, %581 : vector<2x128xf32>
    %583 = arith.andi %462, %582 : vector<2x128xi1>
    %584 = arith.subf %342, %526 : vector<2x128xf32>
    %585 = arith.mulf %584, %584 : vector<2x128xf32>
    %586 = arith.subf %343, %527 : vector<2x128xf32>
    %587 = arith.mulf %586, %586 : vector<2x128xf32>
    %588 = arith.addf %585, %587 : vector<2x128xf32>
    %cst_185 = arith.constant 2.500000e-01 : f32
    %589 = vector.broadcast %cst_185 : f32 to vector<2x128xf32>
    %590 = arith.cmpf ogt, %588, %589 : vector<2x128xf32>
    %591 = arith.andi %470, %590 : vector<2x128xi1>
    %c0_186 = arith.constant 0 : index
    %c1_187 = arith.constant 1 : index
    %c0_188 = arith.constant 0 : index
    %c0_189 = arith.constant 0 : index
    %592 = vector.load %arg4[%c0_186, %c1_187, %c0_188, %c0_189] : memref<1x3x2x128xi32, #tpu.memory_space<vmem>>, vector<1x1x2x128xi32>
    %593 = vector.shape_cast %592 : vector<1x1x2x128xi32> to vector<2x128xi32>
    %594 = vector.shape_cast %493 : vector<2x128xi32> to vector<1x1x2x128xi32>
    tpu.vector_store %arg4[%c0_186, %c1_187, %c0_188, %c0_189], %594 {strides = array<i32>} : memref<1x3x2x128xi32, #tpu.memory_space<vmem>>, vector<1x1x2x128xi32>,
    %c8_i32_190 = arith.constant 8 : i32
    %595 = vector.broadcast %c8_i32_190 : i32 to vector<2x128xi32>
    %c7_i32_191 = arith.constant 7 : i32
    %596 = vector.broadcast %c7_i32_191 : i32 to vector<2x128xi32>
    %597 = arith.select %591, %596, %595 : vector<2x128xi1>, vector<2x128xi32>
    %c6_i32_192 = arith.constant 6 : i32
    %598 = vector.broadcast %c6_i32_192 : i32 to vector<2x128xi32>
    %599 = arith.select %583, %598, %597 : vector<2x128xi1>, vector<2x128xi32>
    %c5_i32_193 = arith.constant 5 : i32
    %600 = vector.broadcast %c5_i32_193 : i32 to vector<2x128xi32>
    %601 = arith.select %575, %600, %599 : vector<2x128xi1>, vector<2x128xi32>
    %c4_i32_194 = arith.constant 4 : i32
    %602 = vector.broadcast %c4_i32_194 : i32 to vector<2x128xi32>
    %603 = arith.select %567, %602, %601 : vector<2x128xi1>, vector<2x128xi32>
    %c3_i32_195 = arith.constant 3 : i32
    %604 = vector.broadcast %c3_i32_195 : i32 to vector<2x128xi32>
    %605 = arith.select %559, %604, %603 : vector<2x128xi1>, vector<2x128xi32>
    %c2_i32_196 = arith.constant 2 : i32
    %606 = vector.broadcast %c2_i32_196 : i32 to vector<2x128xi32>
    %607 = arith.select %551, %606, %605 : vector<2x128xi1>, vector<2x128xi32>
    %c1_i32_197 = arith.constant 1 : i32
    %608 = vector.broadcast %c1_i32_197 : i32 to vector<2x128xi32>
    %609 = arith.select %543, %608, %607 : vector<2x128xi1>, vector<2x128xi32>
    %c0_i32_198 = arith.constant 0 : i32
    %610 = vector.broadcast %c0_i32_198 : i32 to vector<2x128xi32>
    %611 = arith.select %535, %610, %609 : vector<2x128xi1>, vector<2x128xi32>
    %c8_i32_199 = arith.constant 8 : i32
    %612 = vector.broadcast %c8_i32_199 : i32 to vector<2x128xi32>
    %613 = arith.cmpi slt, %611, %612 : vector<2x128xi32>
    %614 = arith.select %613, %611, %493 : vector<2x128xi1>, vector<2x128xi32>
    %c0_200 = arith.constant 0 : index
    %c2_201 = arith.constant 2 : index
    %c0_202 = arith.constant 0 : index
    %c0_203 = arith.constant 0 : index
    %615 = vector.load %arg4[%c0_200, %c2_201, %c0_202, %c0_203] : memref<1x3x2x128xi32, #tpu.memory_space<vmem>>, vector<1x1x2x128xi32>
    %616 = vector.shape_cast %615 : vector<1x1x2x128xi32> to vector<2x128xi32>
    %617 = vector.shape_cast %614 : vector<2x128xi32> to vector<1x1x2x128xi32>
    tpu.vector_store %arg4[%c0_200, %c2_201, %c0_202, %c0_203], %617 {strides = array<i32>} : memref<1x3x2x128xi32, #tpu.memory_space<vmem>>, vector<1x1x2x128xi32>,
    return
  }
  func.func @transform_0(%arg0: i32, %arg1: i32) -> (i32, i32, i32, i32, i32) {
    %c0_i32 = arith.constant 0 : i32
    %c0_i32_0 = arith.constant 0 : i32
    %c0_i32_1 = arith.constant 0 : i32
    %c0_i32_2 = arith.constant 0 : i32
    return %arg0, %c0_i32, %c0_i32_0, %arg1, %c0_i32_1 : i32, i32, i32, i32, i32
  }
  func.func @transform_1(%arg0: i32, %arg1: i32) -> (i32, i32) {
    %c0_i32 = arith.constant 0 : i32
    %c0_i32_0 = arith.constant 0 : i32
    %c0_i32_1 = arith.constant 0 : i32
    return %c0_i32, %c0_i32_0 : i32, i32
  }
  func.func @transform_2(%arg0: i32, %arg1: i32) -> (i32, i32, i32, i32) {
    %c0_i32 = arith.constant 0 : i32
    %c0_i32_0 = arith.constant 0 : i32
    %c0_i32_1 = arith.constant 0 : i32
    return %arg0, %c0_i32, %arg1, %c0_i32_0 : i32, i32, i32, i32
  }
}

</mosaic_0001>

<llo_original>
// kernel: tpu_custom_call.1
$region0: #{tpu_custom_call.1}
  #allocation0 [shape = 'u32[]', space=smem, size = 0x4, offset = 0x4, fixed_abs, tag = 'smem constant byte address 0x4 - core index']
  #allocation1 [shape = 'u32[72,128]{1,0:T(1,128)}', space=vmem, size = 0x9000, scoped, tag = 'internal scratch']
  %s0 = inlined_call_operand.hbm [shape: f32[2,8,3,2,128], index: 0, kind: input, shape index: {}]
  %s1 = inlined_call_operand.hbm [shape: f32[2,12], index: 1, kind: input, shape index: {}]
  %s2 = inlined_call_operand.hbm [shape: s32[2,3,2,128], index: 2, kind: output, shape index: {}]
  %s3 = sld [smem:[#allocation0]]
  $region49: #{tpu_custom_call.1} parent=0
    _
  %s5 = ssub.s32 1, %s3
  %s6 = scalar_select 0, %s5, %s3
  $region1: #{tpu_custom_call.1} parent=0
    #allocation2 [shape = 'u8[49152]{0}', space=vmem, size = 0xc000, scoped, tag = 'input window, operand 0']
    #allocation3 [shape = 's32[2]{0}', space=sflag, size = 0x8, scoped, tag = 'scoped memory for tpu_custom_call.1']
    #allocation4 [shape = 's32[2]{0}', space=sflag, size = 0x8, scoped, tag = 'scoped memory for tpu_custom_call.1']
    #allocation5 [shape = 's32[2]{0}', space=sflag, size = 0x8, scoped, tag = 'scoped memory for tpu_custom_call.1']
    #allocation6 [shape = 'u8[1024]{0}', space=smem, size = 0x400, scoped, tag = 'input window, operand 1, single buffered']
    #allocation7 [shape = 'u8[6144]{0}', space=vmem, size = 0x1800, scoped, tag = 'output window, operand 0']
    %7 = vsyncpa [#allocation3], 0
    %s8 = scalar_lea.sflag [#allocation3], 1
    %9 = vsyncpa %s8, 0
    %10 = vsyncpa [#allocation5], 0
    %11 = vsyncpa [#allocation4], 0
    %s12 = scalar_lea.sflag [#allocation4], 1
    %13 = vsyncpa %s12, 0
    loop: start=0, step=1, limit=4
    $region2: #{tpu_custom_call.1} parent=1 // loop_pre_header
      _
    $region3: #{tpu_custom_call.1} parent=1 // loop_header
      %s15 = sphi 0, %s19
      %p16 = scmp.ge.s32.totalorder %s15, 4
      %s22 = sphi 0, %s34
      %s23 = sphi 0, %s30
      %s24 = sphi 0, %s22
      %s25 = sphi 0, %s23
      %s26 = sphi 0, %s24
      %s27 = sphi 0, %s25
      %s39 = sphi 0, %s41
      %s42 = sphi 0, %s39
      %s43 = sphi 0, %s42
      %s59 = sphi 0, %s43
      %s63 = sphi 0, %s63
      %s65 = sphi 0, %s63
      %s66 = sphi 0, %s65
      %s80 = sphi 0, %s66
      %s88 = sphi 0, %s90
      %s91 = sphi 0, %s88
      %s92 = sphi 0, %s91
      %s108 = sphi 0, %s92
    $region4: #{tpu_custom_call.1} parent=1 // loop_header_branch
      %18 = sbr.rel (%p16) target = $region8
    $region5: #{tpu_custom_call.1} parent=1 // loop_body
      %s20 = ssub.s32 %s15, 1
      %s21 = ssub.s32 %s15, 2
      %s28 = sadd.s32 1, %s23
      %p29 = scmp.ge.s32.totalorder %s28, 1
      %s30 = scalar_select %p29, 0, %s28
      %s31 = sadd.s32 1, %s22
      %s32 = scalar_select %p29, %s31, %s22
      %p33 = scmp.ge.s32.totalorder %s32, 2
      %s34 = scalar_select %p33, 0, %s32
      %s35 = ssub.s32 %s22, %s34
      %s36 = ssub.s32 %s23, %s30
      %s37 = sor.u32 %s35, %s36
      %p38 = scmp.eq.s32.totalorder %s37, 0
      %s40 = sadd.s32 %s39, 1
      %s41 = scalar_select %p38, %s39, %s40
      %p44 = pneg %p38
      %p45 = scmp.eq.s32.totalorder %s15, 1
      %p46 = por %p44, %p45
      %p47 = scmp.ne.s32.totalorder %s39, %s42
      %p48 = scmp.eq.s32.totalorder %s15, 0
      %p49 = por %p47, %p48
      %p50 = scmp.ne.s32.totalorder %s39, %s42
      %p51 = scmp.eq.s32.totalorder %s20, 1
      %p52 = por %p50, %p51
      %p53 = scmp.ne.s32.totalorder %s42, %s43
      %p54 = scmp.eq.s32.totalorder %s20, 0
      %p55 = por %p53, %p54
      %p56 = scmp.ne.s32.totalorder %s42, %s43
      %p57 = scmp.eq.s32.totalorder %s21, 1
      %p58 = por %p56, %p57
      %p60 = scmp.ne.s32.totalorder %s43, %s59
      %p61 = scmp.eq.s32.totalorder %s21, 0
      %p62 = por %p60, %p61
      %s64 = sadd.s32 %s63, 1
      %p67 = scmp.eq.s32.totalorder %s15, 1
      %p68 = scmp.ne.s32.totalorder %s63, %s65
      %p69 = scmp.eq.s32.totalorder %s15, 0
      %p70 = por %p68, %p69
      %p71 = scmp.ne.s32.totalorder %s63, %s65
      %p72 = scmp.eq.s32.totalorder %s20, 1
      %p73 = por %p71, %p72
      %p74 = scmp.ne.s32.totalorder %s65, %s66
      %p75 = scmp.eq.s32.totalorder %s20, 0
      %p76 = por %p74, %p75
      %p77 = scmp.ne.s32.totalorder %s65, %s66
      %p78 = scmp.eq.s32.totalorder %s21, 1
      %p79 = por %p77, %p78
      %p81 = scmp.ne.s32.totalorder %s66, %s80
      %p82 = scmp.eq.s32.totalorder %s21, 0
      %p83 = por %p81, %p82
      %s84 = ssub.s32 %s22, %s34
      %s85 = ssub.s32 %s23, %s30
      %s86 = sor.u32 %s84, %s85
      %p87 = scmp.eq.s32.totalorder %s86, 0
      %s89 = sadd.s32 %s88, 1
      %s90 = scalar_select %p87, %s88, %s89
      %p93 = pneg %p87
      %p94 = scmp.eq.s32.totalorder %s15, 1
      %p95 = por %p93, %p94
      %p96 = scmp.ne.s32.totalorder %s88, %s91
      %p97 = scmp.eq.s32.totalorder %s15, 0
      %p98 = por %p96, %p97
      %p99 = scmp.ne.s32.totalorder %s88, %s91
      %p100 = scmp.eq.s32.totalorder %s20, 1
      %p101 = por %p99, %p100
      %p102 = scmp.ne.s32.totalorder %s91, %s92
      %p103 = scmp.eq.s32.totalorder %s20, 0
      %p104 = por %p102, %p103
      %p105 = scmp.ne.s32.totalorder %s91, %s92
      %p106 = scmp.eq.s32.totalorder %s21, 1
      %p107 = por %p105, %p106
      %p109 = scmp.ne.s32.totalorder %s92, %s108
      %p110 = scmp.eq.s32.totalorder %s21, 0
      %p111 = por %p109, %p110
      %p112 = scmp.le.s32.totalorder 1, %s15
      %p113 = scmp.lt.s32.totalorder %s15, 3
      %p114 = pnand %p112, %p113
      %p115 = pneg %p114
      // Predicated region
      $region9: #{tpu_custom_call.1} parent=5 // pred_check
        _
      $region10: #{tpu_custom_call.1} parent=5 // pred_check_branch
        %117 = sbr.rel (%p114) target = $region12
      $region11: #{tpu_custom_call.1} parent=5 // pred_region
        %s118 = ssub.s32 %s15, 1
        // Predicated region
        $region13: #{tpu_custom_call.1} parent=11 // pred_check
          %p119 = pneg %p76
        $region14: #{tpu_custom_call.1} parent=11 // pred_check_branch
          %121 = sbr.rel (%p119) target = $region16
        $region15: #{tpu_custom_call.1} parent=11 // pred_region
          %123 = vsyncadd [#allocation5], 0
          %s125 = sshll.u32 %s1, 4
          %s126 = int_to_ptr.hbm [resolvable:$true] %s125
          %128 = dma.hbm_to_smem %s126, 32, [#allocation6], [#allocation5]
        $region16: #{tpu_custom_call.1} parent=11 // pred_fallthru
          _
      $region12: #{tpu_custom_call.1} parent=5 // pred_fallthru
        _
      %p129 = scmp.lt.s32.totalorder %s15, 2
      // Predicated region
      $region17: #{tpu_custom_call.1} parent=5 // pred_check
        %p130 = pneg %p129
      $region18: #{tpu_custom_call.1} parent=5 // pred_check_branch
        %132 = sbr.rel (%p130) target = $region20
      $region19: #{tpu_custom_call.1} parent=5 // pred_region
        // Predicated region
        $region21: #{tpu_custom_call.1} parent=19 // pred_check
          %p133 = pneg %p49
        $region22: #{tpu_custom_call.1} parent=19 // pred_check_branch
          %135 = sbr.rel (%p133) target = $region24
        $region23: #{tpu_custom_call.1} parent=19 // pred_region
          %s136 = sand.u32 %s39, 1
          %s137 = scalar_lea.sflag [#allocation3], %s136
          %s138 = sand.u32 %s39, 1
          %s139 = smul.addr %s138, 48
          %s140 = scalar_lea.vmem [#allocation2], %s139
          %142 = vsyncadd %s137, 0
          %s143 = smul.addr %s22, 24
          %s144 = sadd.s32 %s23, %s143
          %s145 = smul.addr %s144, 2
          %s146 = scalar_lea.hbm %s0, %s145
          %s147 = sshll.u32 %s146, 4
          %s148 = int_to_ptr.hbm [resolvable:$true] %s147
          %s149 = sshll.u32 %s140, 4
          %s150 = int_to_ptr.vmem [resolvable:$true] %s149
          %155 = dma.hbm_to_vmem [thread:$0]  %s148, 768, %s150, %s137, 32, 32, 2
        $region24: #{tpu_custom_call.1} parent=19 // pred_fallthru
          _
      $region20: #{tpu_custom_call.1} parent=5 // pred_fallthru
        _
      %p156 = scmp.le.s32.totalorder 1, %s15
      %p157 = scmp.lt.s32.totalorder %s15, 3
      %p158 = pnand %p156, %p157
      %p159 = pneg %p158
      // Predicated region
      $region25: #{tpu_custom_call.1} parent=5 // pred_check
        _
      $region26: #{tpu_custom_call.1} parent=5 // pred_check_branch
        %161 = sbr.rel (%p158) target = $region28
      $region27: #{tpu_custom_call.1} parent=5 // pred_region
        %s162 = ssub.s32 %s15, 1
        %s163 = sand.u32 %s42, 1
        %s164 = scalar_lea.sflag [#allocation3], %s163
        %s165 = sand.u32 %s42, 1
        %s166 = smul.addr %s165, 48
        %s167 = scalar_lea.vmem [#allocation2], %s166
        // Predicated region
        $region29: #{tpu_custom_call.1} parent=27 // pred_check
          %p168 = pneg %p55
        $region30: #{tpu_custom_call.1} parent=27 // pred_check_branch
          %170 = sbr.rel (%p168) target = $region32
        $region31: #{tpu_custom_call.1} parent=27 // pred_region
          %172 = dma.done %s164, 768
        $region32: #{tpu_custom_call.1} parent=27 // pred_fallthru
          _
        // Predicated region
        $region33: #{tpu_custom_call.1} parent=27 // pred_check
          %p173 = pneg %p76
        $region34: #{tpu_custom_call.1} parent=27 // pred_check_branch
          %175 = sbr.rel (%p173) target = $region36
        $region35: #{tpu_custom_call.1} parent=27 // pred_region
          %177 = dma.done [#allocation5], 32
        $region36: #{tpu_custom_call.1} parent=27 // pred_fallthru
          _
        %178 = sfence
        %s179 = sand.u32 %s42, 1
        %s180 = scalar_lea.sflag [#allocation3], %s179
        %s181 = sand.u32 %s42, 1
        %s182 = smul.addr %s181, 48
        %s183 = scalar_lea.vmem [#allocation2], %s182
        %p184 = pneg %p55
        %p185 = pneg %p52
        %p186 = pneg %p76
        %p187 = pneg %p73
        %p188 = pneg %p104
        %p189 = pneg %p101
        %s190 = sand.u32 %s91, 1
        %s191 = scalar_lea.sflag [#allocation4], %s190
        %s192 = sand.u32 %s91, 1
        %s193 = smul.addr %s192, 6
        %s194 = scalar_lea.vmem [#allocation7], %s193
        %s195 = smul.u32 %s24, 128
        %s196 = sld [smem:[#allocation6 + %s195]]
        %s197 = sadd.s32 %s195, 1
        %s198 = sld [smem:[#allocation6 + %s197]]
        %s199 = sadd.s32 %s195, 2
        %s200 = sld [smem:[#allocation6 + %s199]]
        %s201 = sadd.s32 %s195, 3
        %s202 = sld [smem:[#allocation6 + %s201]]
        %s203 = sadd.s32 %s195, 4
        %s204 = sld [smem:[#allocation6 + %s203]]
        %s205 = sadd.s32 %s195, 5
        %s206 = sld [smem:[#allocation6 + %s205]]
        %s207 = sadd.s32 %s195, 6
        %s208 = sld [smem:[#allocation6 + %s207]]
        %s209 = sadd.s32 %s195, 7
        %s210 = sld [smem:[#allocation6 + %s209]]
        %s211 = sadd.s32 %s195, 8
        %s212 = sld [smem:[#allocation6 + %s211]]
        %s213 = sadd.s32 %s195, 9
        %s214 = sld [smem:[#allocation6 + %s213]]
        %s215 = sadd.s32 %s195, 10
        %s216 = sld [smem:[#allocation6 + %s215]]
        %s217 = sadd.s32 %s195, 11
        %s218 = sld [smem:[#allocation6 + %s217]]
        %v219 = vld [vmem:[%s167] sm:$0x3]
        %s220 = scalar_lea.vmem %s167, 2 [#allocation2]
        %v221 = vld [vmem:[%s220] sm:$0x3]
        %s222 = scalar_lea.vmem %s167, 4 [#allocation2]
        %v223 = vld [vmem:[%s222] sm:$0x3]
        %v224 = vstv %s196
        %v225 = vmul.f32 %v224, %v219
        %v226 = vstv %s198
        %v227 = vmul.f32 %v226, %v221
        %v228 = vadd.f32 %v225, %v227
        %v229 = vstv %s200
        %v230 = vmul.f32 %v229, %v223
        %v231 = vadd.f32 %v228, %v230
        %v232 = vstv %s202
        %v233 = vadd.f32 %v231, %v232
        %v234 = vstv %s204
        %v235 = vmul.f32 %v234, %v219
        %v236 = vstv %s206
        %v237 = vmul.f32 %v236, %v221
        %v238 = vadd.f32 %v235, %v237
        %v239 = vstv %s208
        %v240 = vmul.f32 %v239, %v223
        %v241 = vadd.f32 %v238, %v240
        %v242 = vstv %s210
        %v243 = vadd.f32 %v241, %v242
        %v244 = vstv %s212
        %v245 = vmul.f32 %v244, %v219
        %v246 = vstv %s214
        %v247 = vmul.f32 %v246, %v221
        %v248 = vadd.f32 %v245, %v247
        %v249 = vstv %s216
        %v250 = vmul.f32 %v249, %v223
        %v251 = vadd.f32 %v248, %v250
        %v252 = vstv %s218
        %v253 = vadd.f32 %v251, %v252
        %v254 = vrcp.pop %v253
        %v255 = vmul.f32 %v253, %v254
        %v256 = vsub.f32 1.0, %v255
        %v257 = vmul.f32 %v254, %v256
        %v258 = vadd.f32 %v254, %v257
        %vm259 = vweird.f32 %v253
        %vm260 = vweird.f32 %v254
        %vm261 = vmor %vm259, %vm260
        %v262 = vsel %vm261, %v254, %v258
        %v263 = vand.u32 2147483647, %v253
        %vm264 = vcmp.eq.f32.partialorder %v263, 8.507059e+37
        %v265 = vand.u32 %v253, 2147483648
        %v266 = vor.u32 1.1754944e-38, %v265
        %v267 = vsel %vm264, %v266, %v262
        %v268 = vmul.f32 1.0, %v267
        %v269 = vmul.f32 %v233, %v268
        %v270 = vmul.f32 %v243, %v268
        %s271 = scalar_lea.vmem %s167, 6 [#allocation2]
        %v272 = vld [vmem:[%s271] sm:$0x3]
        %s273 = scalar_lea.vmem %s167, 8 [#allocation2]
        %v274 = vld [vmem:[%s273] sm:$0x3]
        %s275 = scalar_lea.vmem %s167, 10 [#allocation2]
        %v276 = vld [vmem:[%s275] sm:$0x3]
        %v277 = vmul.f32 %v224, %v272
        %v278 = vmul.f32 %v226, %v274
        %v279 = vadd.f32 %v277, %v278
        %v280 = vmul.f32 %v229, %v276
        %v281 = vadd.f32 %v279, %v280
        %v282 = vadd.f32 %v281, %v232
        %v283 = vmul.f32 %v234, %v272
        %v284 = vmul.f32 %v236, %v274
        %v285 = vadd.f32 %v283, %v284
        %v286 = vmul.f32 %v239, %v276
        %v287 = vadd.f32 %v285, %v286
        %v288 = vadd.f32 %v287, %v242
        %v289 = vmul.f32 %v244, %v272
        %v290 = vmul.f32 %v246, %v274
        %v291 = vadd.f32 %v289, %v290
        %v292 = vmul.f32 %v249, %v276
        %v293 = vadd.f32 %v291, %v292
        %v294 = vadd.f32 %v293, %v252
        %v295 = vrcp.pop %v294
        %v296 = vmul.f32 %v294, %v295
        %v297 = vsub.f32 1.0, %v296
        %v298 = vmul.f32 %v295, %v297
        %v299 = vadd.f32 %v295, %v298
        %vm300 = vweird.f32 %v294
        %vm301 = vweird.f32 %v295
        %vm302 = vmor %vm300, %vm301
        %v303 = vsel %vm302, %v295, %v299
        %v304 = vand.u32 2147483647, %v294
        %vm305 = vcmp.eq.f32.partialorder %v304, 8.507059e+37
        %v306 = vand.u32 %v294, 2147483648
        %v307 = vor.u32 1.1754944e-38, %v306
        %v308 = vsel %vm305, %v307, %v303
        %v309 = vmul.f32 1.0, %v308
        %v310 = vmul.f32 %v282, %v309
        %v311 = vmul.f32 %v288, %v309
        %s312 = scalar_lea.vmem %s167, 12 [#allocation2]
        %v313 = vld [vmem:[%s312] sm:$0x3]
        %s314 = scalar_lea.vmem %s167, 14 [#allocation2]
        %v315 = vld [vmem:[%s314] sm:$0x3]
        %s316 = scalar_lea.vmem %s167, 16 [#allocation2]
        %v317 = vld [vmem:[%s316] sm:$0x3]
        %v318 = vmul.f32 %v224, %v313
        %v319 = vmul.f32 %v226, %v315
        %v320 = vadd.f32 %v318, %v319
        %v321 = vmul.f32 %v229, %v317
        %v322 = vadd.f32 %v320, %v321
        %v323 = vadd.f32 %v322, %v232
        %v324 = vmul.f32 %v234, %v313
        %v325 = vmul.f32 %v236, %v315
        %v326 = vadd.f32 %v324, %v325
        %v327 = vmul.f32 %v239, %v317
        %v328 = vadd.f32 %v326, %v327
        %v329 = vadd.f32 %v328, %v242
        %v330 = vmul.f32 %v244, %v313
        %v331 = vmul.f32 %v246, %v315
        %v332 = vadd.f32 %v330, %v331
        %v333 = vmul.f32 %v249, %v317
        %v334 = vadd.f32 %v332, %v333
        %v335 = vadd.f32 %v334, %v252
        %v336 = vrcp.pop %v335
        %v337 = vmul.f32 %v335, %v336
        %v338 = vsub.f32 1.0, %v337
        %v339 = vmul.f32 %v336, %v338
        %v340 = vadd.f32 %v336, %v339
        %vm341 = vweird.f32 %v335
        %vm342 = vweird.f32 %v336
        %vm343 = vmor %vm341, %vm342
        %v344 = vsel %vm343, %v336, %v340
        %v345 = vand.u32 2147483647, %v335
        %vm346 = vcmp.eq.f32.partialorder %v345, 8.507059e+37
        %v347 = vand.u32 %v335, 2147483648
        %v348 = vor.u32 1.1754944e-38, %v347
        %v349 = vsel %vm346, %v348, %v344
        %v350 = vmul.f32 1.0, %v349
        %v351 = vmul.f32 %v323, %v350
        %v352 = vmul.f32 %v329, %v350
        %s353 = scalar_lea.vmem %s167, 18 [#allocation2]
        %v354 = vld [vmem:[%s353] sm:$0x3]
        %s355 = scalar_lea.vmem %s167, 20 [#allocation2]
        %v356 = vld [vmem:[%s355] sm:$0x3]
        %s357 = scalar_lea.vmem %s167, 22 [#allocation2]
        %v358 = vld [vmem:[%s357] sm:$0x3]
        %v359 = vmul.f32 %v224, %v354
        %v360 = vmul.f32 %v226, %v356
        %v361 = vadd.f32 %v359, %v360
        %v362 = vmul.f32 %v229, %v358
        %v363 = vadd.f32 %v361, %v362
        %v364 = vadd.f32 %v363, %v232
        %v365 = vmul.f32 %v234, %v354
        %v366 = vmul.f32 %v236, %v356
        %v367 = vadd.f32 %v365, %v366
        %v368 = vmul.f32 %v239, %v358
        %v369 = vadd.f32 %v367, %v368
        %v370 = vadd.f32 %v369, %v242
        %v371 = vmul.f32 %v244, %v354
        %v372 = vmul.f32 %v246, %v356
        %v373 = vadd.f32 %v371, %v372
        %v374 = vmul.f32 %v249, %v358
        %v375 = vadd.f32 %v373, %v374
        %v376 = vadd.f32 %v375, %v252
        %v377 = vrcp.pop %v376
        %v378 = vmul.f32 %v376, %v377
        %v379 = vsub.f32 1.0, %v378
        %v380 = vmul.f32 %v377, %v379
        %v381 = vadd.f32 %v377, %v380
        %vm382 = vweird.f32 %v376
        %vm383 = vweird.f32 %v377
        %vm384 = vmor %vm382, %vm383
        %v385 = vsel %vm384, %v377, %v381
        %v386 = vand.u32 2147483647, %v376
        %vm387 = vcmp.eq.f32.partialorder %v386, 8.507059e+37
        %v388 = vand.u32 %v376, 2147483648
        %v389 = vor.u32 1.1754944e-38, %v388
        %v390 = vsel %vm387, %v389, %v385
        %v391 = vmul.f32 1.0, %v390
        %v392 = vmul.f32 %v364, %v391
        %v393 = vmul.f32 %v370, %v391
        %s394 = scalar_lea.vmem %s167, 24 [#allocation2]
        %v395 = vld [vmem:[%s394] sm:$0x3]
        %s396 = scalar_lea.vmem %s167, 26 [#allocation2]
        %v397 = vld [vmem:[%s396] sm:$0x3]
        %s398 = scalar_lea.vmem %s167, 28 [#allocation2]
        %v399 = vld [vmem:[%s398] sm:$0x3]
        %v400 = vmul.f32 %v224, %v395
        %v401 = vmul.f32 %v226, %v397
        %v402 = vadd.f32 %v400, %v401
        %v403 = vmul.f32 %v229, %v399
        %v404 = vadd.f32 %v402, %v403
        %v405 = vadd.f32 %v404, %v232
        %v406 = vmul.f32 %v234, %v395
        %v407 = vmul.f32 %v236, %v397
        %v408 = vadd.f32 %v406, %v407
        %v409 = vmul.f32 %v239, %v399
        %v410 = vadd.f32 %v408, %v409
        %v411 = vadd.f32 %v410, %v242
        %v412 = vmul.f32 %v244, %v395
        %v413 = vmul.f32 %v246, %v397
        %v414 = vadd.f32 %v412, %v413
        %v415 = vmul.f32 %v249, %v399
        %v416 = vadd.f32 %v414, %v415
        %v417 = vadd.f32 %v416, %v252
        %v418 = vrcp.pop %v417
        %v419 = vmul.f32 %v417, %v418
        %v420 = vsub.f32 1.0, %v419
        %v421 = vmul.f32 %v418, %v420
        %v422 = vadd.f32 %v418, %v421
        %vm423 = vweird.f32 %v417
        %vm424 = vweird.f32 %v418
        %vm425 = vmor %vm423, %vm424
        %v426 = vsel %vm425, %v418, %v422
        %v427 = vand.u32 2147483647, %v417
        %vm428 = vcmp.eq.f32.partialorder %v427, 8.507059e+37
        %v429 = vand.u32 %v417, 2147483648
        %v430 = vor.u32 1.1754944e-38, %v429
        %v431 = vsel %vm428, %v430, %v426
        %v432 = vmul.f32 1.0, %v431
        %v433 = vmul.f32 %v405, %v432
        %v434 = vmul.f32 %v411, %v432
        %s435 = scalar_lea.vmem %s167, 30 [#allocation2]
        %v436 = vld [vmem:[%s435] sm:$0x3]
        %s437 = scalar_lea.vmem %s167, 32 [#allocation2]
        %v438 = vld [vmem:[%s437] sm:$0x3]
        %s439 = scalar_lea.vmem %s167, 34 [#allocation2]
        %v440 = vld [vmem:[%s439] sm:$0x3]
        %v441 = vmul.f32 %v224, %v436
        %v442 = vmul.f32 %v226, %v438
        %v443 = vadd.f32 %v441, %v442
        %v444 = vmul.f32 %v229, %v440
        %v445 = vadd.f32 %v443, %v444
        %v446 = vadd.f32 %v445, %v232
        %v447 = vmul.f32 %v234, %v436
        %v448 = vmul.f32 %v236, %v438
        %v449 = vadd.f32 %v447, %v448
        %v450 = vmul.f32 %v239, %v440
        %v451 = vadd.f32 %v449, %v450
        %v452 = vadd.f32 %v451, %v242
        %v453 = vmul.f32 %v244, %v436
        %v454 = vmul.f32 %v246, %v438
        %v455 = vadd.f32 %v453, %v454
        %v456 = vmul.f32 %v249, %v440
        %v457 = vadd.f32 %v455, %v456
        %v458 = vadd.f32 %v457, %v252
        %v459 = vrcp.pop %v458
        %v460 = vmul.f32 %v458, %v459
        %v461 = vsub.f32 1.0, %v460
        %v462 = vmul.f32 %v459, %v461
        %v463 = vadd.f32 %v459, %v462
        %vm464 = vweird.f32 %v458
        %vm465 = vweird.f32 %v459
        %vm466 = vmor %vm464, %vm465
        %v467 = vsel %vm466, %v459, %v463
        %v468 = vand.u32 2147483647, %v458
        %vm469 = vcmp.eq.f32.partialorder %v468, 8.507059e+37
        %v470 = vand.u32 %v458, 2147483648
        %v471 = vor.u32 1.1754944e-38, %v470
        %v472 = vsel %vm469, %v471, %v467
        %v473 = vmul.f32 1.0, %v472
        %v474 = vmul.f32 %v446, %v473
        %v475 = vmul.f32 %v452, %v473
        %s476 = scalar_lea.vmem %s167, 36 [#allocation2]
        %v477 = vld [vmem:[%s476] sm:$0x3]
        %s478 = scalar_lea.vmem %s167, 38 [#allocation2]
        %v479 = vld [vmem:[%s478] sm:$0x3]
        %s480 = scalar_lea.vmem %s167, 40 [#allocation2]
        %v481 = vld [vmem:[%s480] sm:$0x3]
        %v482 = vmul.f32 %v224, %v477
        %v483 = vmul.f32 %v226, %v479
        %v484 = vadd.f32 %v482, %v483
        %v485 = vmul.f32 %v229, %v481
        %v486 = vadd.f32 %v484, %v485
        %v487 = vadd.f32 %v486, %v232
        %v488 = vmul.f32 %v234, %v477
        %v489 = vmul.f32 %v236, %v479
        %v490 = vadd.f32 %v488, %v489
        %v491 = vmul.f32 %v239, %v481
        %v492 = vadd.f32 %v490, %v491
        %v493 = vadd.f32 %v492, %v242
        %v494 = vmul.f32 %v244, %v477
        %v495 = vmul.f32 %v246, %v479
        %v496 = vadd.f32 %v494, %v495
        %v497 = vmul.f32 %v249, %v481
        %v498 = vadd.f32 %v496, %v497
        %v499 = vadd.f32 %v498, %v252
        %v500 = vrcp.pop %v499
        %v501 = vmul.f32 %v499, %v500
        %v502 = vsub.f32 1.0, %v501
        %v503 = vmul.f32 %v500, %v502
        %v504 = vadd.f32 %v500, %v503
        %vm505 = vweird.f32 %v499
        %vm506 = vweird.f32 %v500
        %vm507 = vmor %vm505, %vm506
        %v508 = vsel %vm507, %v500, %v504
        %v509 = vand.u32 2147483647, %v499
        %vm510 = vcmp.eq.f32.partialorder %v509, 8.507059e+37
        %v511 = vand.u32 %v499, 2147483648
        %v512 = vor.u32 1.1754944e-38, %v511
        %v513 = vsel %vm510, %v512, %v508
        %v514 = vmul.f32 1.0, %v513
        %v515 = vmul.f32 %v487, %v514
        %v516 = vmul.f32 %v493, %v514
        %s517 = scalar_lea.vmem %s167, 42 [#allocation2]
        %v518 = vld [vmem:[%s517] sm:$0x3]
        %s519 = scalar_lea.vmem %s167, 44 [#allocation2]
        %v520 = vld [vmem:[%s519] sm:$0x3]
        %s521 = scalar_lea.vmem %s167, 46 [#allocation2]
        %v522 = vld [vmem:[%s521] sm:$0x3]
        %v523 = vmul.f32 %v224, %v518
        %v524 = vmul.f32 %v226, %v520
        %v525 = vadd.f32 %v523, %v524
        %v526 = vmul.f32 %v229, %v522
        %v527 = vadd.f32 %v525, %v526
        %v528 = vadd.f32 %v527, %v232
        %v529 = vmul.f32 %v234, %v518
        %v530 = vmul.f32 %v236, %v520
        %v531 = vadd.f32 %v529, %v530
        %v532 = vmul.f32 %v239, %v522
        %v533 = vadd.f32 %v531, %v532
        %v534 = vadd.f32 %v533, %v242
        %v535 = vmul.f32 %v244, %v518
        %v536 = vmul.f32 %v246, %v520
        %v537 = vadd.f32 %v535, %v536
        %v538 = vmul.f32 %v249, %v522
        %v539 = vadd.f32 %v537, %v538
        %v540 = vadd.f32 %v539, %v252
        %v541 = vrcp.pop %v540
        %v542 = vmul.f32 %v540, %v541
        %v543 = vsub.f32 1.0, %v542
        %v544 = vmul.f32 %v541, %v543
        %v545 = vadd.f32 %v541, %v544
        %vm546 = vweird.f32 %v540
        %vm547 = vweird.f32 %v541
        %vm548 = vmor %vm546, %vm547
        %v549 = vsel %vm548, %v541, %v545
        %v550 = vand.u32 2147483647, %v540
        %vm551 = vcmp.eq.f32.partialorder %v550, 8.507059e+37
        %v552 = vand.u32 %v540, 2147483648
        %v553 = vor.u32 1.1754944e-38, %v552
        %v554 = vsel %vm551, %v553, %v549
        %v555 = vmul.f32 1.0, %v554
        %v556 = vmul.f32 %v528, %v555
        %v557 = vmul.f32 %v534, %v555
        %v558 = vsub.f32 %v269, %v269
        %v559 = vmul.f32 %v558, %v558
        %v560 = vsub.f32 %v270, %v270
        %v561 = vmul.f32 %v560, %v560
        %v562 = vadd.f32 %v559, %v561
        %vm563 = vcmp.gt.f32.partialorder %v562, 0.25
        %v564 = vsub.f32 %v310, %v269
        %v565 = vmul.f32 %v564, %v564
        %v566 = vsub.f32 %v311, %v270
        %v567 = vmul.f32 %v566, %v566
        %v568 = vadd.f32 %v565, %v567
        %vm569 = vcmp.gt.f32.partialorder %v568, 0.25
        %v570 = vsub.f32 %v351, %v269
        %v571 = vmul.f32 %v570, %v570
        %v572 = vsub.f32 %v352, %v270
        %v573 = vmul.f32 %v572, %v572
        %v574 = vadd.f32 %v571, %v573
        %vm575 = vcmp.gt.f32.partialorder %v574, 0.25
        %v576 = vsub.f32 %v392, %v269
        %v577 = vmul.f32 %v576, %v576
        %v578 = vsub.f32 %v393, %v270
        %v579 = vmul.f32 %v578, %v578
        %v580 = vadd.f32 %v577, %v579
        %vm581 = vcmp.gt.f32.partialorder %v580, 0.25
        %v582 = vsub.f32 %v433, %v269
        %v583 = vmul.f32 %v582, %v582
        %v584 = vsub.f32 %v434, %v270
        %v585 = vmul.f32 %v584, %v584
        %v586 = vadd.f32 %v583, %v585
        %vm587 = vcmp.gt.f32.partialorder %v586, 0.25
        %v588 = vsub.f32 %v474, %v269
        %v589 = vmul.f32 %v588, %v588
        %v590 = vsub.f32 %v475, %v270
        %v591 = vmul.f32 %v590, %v590
        %v592 = vadd.f32 %v589, %v591
        %vm593 = vcmp.gt.f32.partialorder %v592, 0.25
        %v594 = vsub.f32 %v515, %v269
        %v595 = vmul.f32 %v594, %v594
        %v596 = vsub.f32 %v516, %v270
        %v597 = vmul.f32 %v596, %v596
        %v598 = vadd.f32 %v595, %v597
        %vm599 = vcmp.gt.f32.partialorder %v598, 0.25
        %v600 = vsub.f32 %v556, %v269
        %v601 = vmul.f32 %v600, %v600
        %v602 = vsub.f32 %v557, %v270
        %v603 = vmul.f32 %v602, %v602
        %v604 = vadd.f32 %v601, %v603
        %vm605 = vcmp.gt.f32.partialorder %v604, 0.25
        %606 = vst [vmem:[%s194] sm:$0x3] 0
        %v607 = vsel %vm605, 7, 8
        %v608 = vsel %vm599, 6, %v607
        %v609 = vsel %vm593, 5, %v608
        %v610 = vsel %vm587, 4, %v609
        %v611 = vsel %vm581, 3, %v610
        %v612 = vsel %vm575, 2, %v611
        %v613 = vsel %vm569, 1, %v612
        %v614 = vsel %vm563, 0, %v613
        %vm615 = vcmp.lt.s32.totalorder %v614, 8
        %v616 = vsel %vm615, %v614, 0
        %vm617 = vcmp.eq.s32.totalorder %v616, 0
        %v618 = vsel %vm617, %v269, 0.0
        %v619 = vsel %vm617, %v270, 0.0
        %vm620 = vcmp.eq.s32.totalorder %v616, 1
        %v621 = vsel %vm620, %v310, %v618
        %v622 = vsel %vm620, %v311, %v619
        %vm623 = vcmp.eq.s32.totalorder %v616, 2
        %v624 = vsel %vm623, %v351, %v621
        %v625 = vsel %vm623, %v352, %v622
        %vm626 = vcmp.eq.s32.totalorder %v616, 3
        %v627 = vsel %vm626, %v392, %v624
        %v628 = vsel %vm626, %v393, %v625
        %vm629 = vcmp.eq.s32.totalorder %v616, 4
        %v630 = vsel %vm629, %v433, %v627
        %v631 = vsel %vm629, %v434, %v628
        %vm632 = vcmp.eq.s32.totalorder %v616, 5
        %v633 = vsel %vm632, %v474, %v630
        %v634 = vsel %vm632, %v475, %v631
        %vm635 = vcmp.eq.s32.totalorder %v616, 6
        %v636 = vsel %vm635, %v515, %v633
        %v637 = vsel %vm635, %v516, %v634
        %vm638 = vcmp.eq.s32.totalorder %v616, 7
        %v639 = vsel %vm638, %v556, %v636
        %v640 = vsel %vm638, %v557, %v637
        %v641 = vsub.f32 %v269, %v639
        %v642 = vmul.f32 %v641, %v641
        %v643 = vsub.f32 %v270, %v640
        %v644 = vmul.f32 %v643, %v643
        %v645 = vadd.f32 %v642, %v644
        %vm646 = vcmp.gt.f32.partialorder %v645, 0.25
        %vm647 = vmand %vm563, %vm646
        %v648 = vsub.f32 %v310, %v639
        %v649 = vmul.f32 %v648, %v648
        %v650 = vsub.f32 %v311, %v640
        %v651 = vmul.f32 %v650, %v650
        %v652 = vadd.f32 %v649, %v651
        %vm653 = vcmp.gt.f32.partialorder %v652, 0.25
        %vm654 = vmand %vm569, %vm653
        %v655 = vsub.f32 %v351, %v639
        %v656 = vmul.f32 %v655, %v655
        %v657 = vsub.f32 %v352, %v640
        %v658 = vmul.f32 %v657, %v657
        %v659 = vadd.f32 %v656, %v658
        %vm660 = vcmp.gt.f32.partialorder %v659, 0.25
        %vm661 = vmand %vm575, %vm660
        %v662 = vsub.f32 %v392, %v639
        %v663 = vmul.f32 %v662, %v662
        %v664 = vsub.f32 %v393, %v640
        %v665 = vmul.f32 %v664, %v664
        %v666 = vadd.f32 %v663, %v665
        %vm667 = vcmp.gt.f32.partialorder %v666, 0.25
        %vm668 = vmand %vm581, %vm667
        %v669 = vsub.f32 %v433, %v639
        %v670 = vmul.f32 %v669, %v669
        %v671 = vsub.f32 %v434, %v640
        %v672 = vmul.f32 %v671, %v671
        %v673 = vadd.f32 %v670, %v672
        %vm674 = vcmp.gt.f32.partialorder %v673, 0.25
        %vm675 = vmand %vm587, %vm674
        %v676 = vsub.f32 %v474, %v639
        %v677 = vmul.f32 %v676, %v676
        %v678 = vsub.f32 %v475, %v640
        %v679 = vmul.f32 %v678, %v678
        %v680 = vadd.f32 %v677, %v679
        %vm681 = vcmp.gt.f32.partialorder %v680, 0.25
        %vm682 = vmand %vm593, %vm681
        %v683 = vsub.f32 %v515, %v639
        %v684 = vmul.f32 %v683, %v683
        %v685 = vsub.f32 %v516, %v640
        %v686 = vmul.f32 %v685, %v685
        %v687 = vadd.f32 %v684, %v686
        %vm688 = vcmp.gt.f32.partialorder %v687, 0.25
        %vm689 = vmand %vm599, %vm688
        %v690 = vsub.f32 %v556, %v639
        %v691 = vmul.f32 %v690, %v690
        %v692 = vsub.f32 %v557, %v640
        %v693 = vmul.f32 %v692, %v692
        %v694 = vadd.f32 %v691, %v693
        %vm695 = vcmp.gt.f32.partialorder %v694, 0.25
        %vm696 = vmand %vm605, %vm695
        %s697 = scalar_lea.vmem %s194, 2 [#allocation7]
        %698 = vst [vmem:[%s697] sm:$0x3] %v616
        %v699 = vsel %vm696, 7, 8
        %v700 = vsel %vm689, 6, %v699
        %v701 = vsel %vm682, 5, %v700
        %v702 = vsel %vm675, 4, %v701
        %v703 = vsel %vm668, 3, %v702
        %v704 = vsel %vm661, 2, %v703
        %v705 = vsel %vm654, 1, %v704
        %v706 = vsel %vm647, 0, %v705
        %vm707 = vcmp.lt.s32.totalorder %v706, 8
        %v708 = vsel %vm707, %v706, %v616
        %s709 = scalar_lea.vmem %s194, 4 [#allocation7]
        %710 = vst [vmem:[%s709] sm:$0x3] %v708
        %s711 = sand.u32 %s91, 1
        %s712 = scalar_lea.sflag [#allocation4], %s711
        %s713 = sand.u32 %s91, 1
        %s714 = smul.addr %s713, 6
        %s715 = scalar_lea.vmem [#allocation7], %s714
        // Predicated region
        $region37: #{tpu_custom_call.1} parent=27 // pred_check
          %p716 = pneg %p101
        $region38: #{tpu_custom_call.1} parent=27 // pred_check_branch
          %718 = sbr.rel (%p716) target = $region40
        $region39: #{tpu_custom_call.1} parent=27 // pred_region
          %720 = vsyncadd %s712, 0
          %s721 = smul.addr %s24, 3
          %s722 = sadd.s32 %s25, %s721
          %s723 = smul.addr %s722, 2
          %s724 = scalar_lea.hbm %s2, %s723
          %s725 = sshll.u32 %s715, 4
          %s726 = int_to_ptr.vmem [resolvable:$true] %s725
          %s727 = sshll.u32 %s724, 4
          %s728 = int_to_ptr.hbm [resolvable:$true] %s727
          %733 = dma.vmem_to_hbm [thread:$0]  %s726, 96, %s728, %s712, 32, 32, 2
        $region40: #{tpu_custom_call.1} parent=27 // pred_fallthru
          _
      $region28: #{tpu_custom_call.1} parent=5 // pred_fallthru
        _
      %p734 = scmp.le.s32.totalorder 2, %s15
      // Predicated region
      $region41: #{tpu_custom_call.1} parent=5 // pred_check
        %p735 = pneg %p734
      $region42: #{tpu_custom_call.1} parent=5 // pred_check_branch
        %737 = sbr.rel (%p735) target = $region44
      $region43: #{tpu_custom_call.1} parent=5 // pred_region
        %s738 = ssub.s32 %s15, 2
        // Predicated region
        $region45: #{tpu_custom_call.1} parent=43 // pred_check
          %p739 = pneg %p107
        $region46: #{tpu_custom_call.1} parent=43 // pred_check_branch
          %741 = sbr.rel (%p739) target = $region48
        $region47: #{tpu_custom_call.1} parent=43 // pred_region
          %s742 = sand.u32 %s92, 1
          %s743 = scalar_lea.sflag [#allocation4], %s742
          %s744 = sand.u32 %s92, 1
          %s745 = smul.addr %s744, 6
          %s746 = scalar_lea.vmem [#allocation7], %s745
          %748 = dma.done %s743, 96
        $region48: #{tpu_custom_call.1} parent=43 // pred_fallthru
          _
      $region44: #{tpu_custom_call.1} parent=5 // pred_fallthru
        _
    $region6: #{tpu_custom_call.1} parent=1 // loop_footer
      %s19 = sadd.s32 1, %s15
    $region7: #{tpu_custom_call.1} parent=1 // loop_footer_branch
      %14 = sbr.rel target = $region3
    $region8: #{tpu_custom_call.1} parent=1 // loop_exit
      _
    %749 = vsyncpa [#allocation3], 1
    %s750 = scalar_lea.sflag [#allocation3], 1
    %751 = vsyncpa %s750, 1
    %752 = vsyncpa [#allocation4], 1
    %s753 = scalar_lea.sflag [#allocation4], 1
    %754 = vsyncpa %s753, 1
    %755 = vsyncpa [#allocation5], 1
    %s756 = scalar_lea.sflag [#allocation5], 1
    %757 = vsyncpa %s756, 1

</llo_original>
